<compile_context>
chip_gen: v6e
topology: v6e:2x2x1
jax: 0.10.0
libtpu: 0.0.40
codegen_flags: <defaults>
</compile_context>

<pallas_src>
import functools

import jax
import jax.numpy as jnp
from jax.experimental import pallas as pl
from jax.experimental.pallas import tpu as pltpu


def _erf(x):
    # Abramowitz & Stegun 7.1.26 rational approximation, |err| < 1.5e-7
    # (exact-GELU / nn.GELU default semantics to f32 precision).
    p = 0.3275911
    a1, a2, a3, a4, a5 = (0.254829592, -0.284496736, 1.421413741,
                          -1.453152027, 1.061405429)
    sgn = jnp.where(x >= 0.0, 1.0, -1.0)
    ax = jnp.abs(x)
    t = 1.0 / (1.0 + p * ax)
    poly = ((((a5 * t + a4) * t + a3) * t + a2) * t + a1) * t
    return sgn * (1.0 - poly * jnp.exp(-ax * ax))


def _gelu_exact(x):
    # NOTE: on v5e a tanh-approx GELU would be cheaper (EUP) but changes numerics; kept exact.
    return 0.5 * x * (1.0 + _erf(x * 0.7071067811865476))


def _layernorm(x, g, b, eps=1e-5):
    mu = jnp.mean(x, axis=-1, keepdims=True)
    var = jnp.mean((x - mu) ** 2, axis=-1, keepdims=True)
    return (x - mu) * jax.lax.rsqrt(var + eps) * g + b


def _transformer_block_kernel(H, mlp_chunk,
                              x_ref, ln1_g_ref, ln1_b_ref,
                              wqkv_ref, bqkv_ref, wo_ref, bo_ref,
                              ln2_g_ref, ln2_b_ref,
                              w1_ref, b1_ref, w2_ref, b2_ref, o_ref):
    S, E = x_ref.shape[1], x_ref.shape[2]
    MLP = w1_ref.shape[1]
    D = E // H

    x = x_ref[0]                                                    # (S, E) f32

    # ---- LayerNorm 1 (f32 stats) ----
    xn = _layernorm(x, ln1_g_ref[...], ln1_b_ref[...])

    # ---- fused QKV projection: one wide MXU matmul, bf16 operands, f32 accumulation ----
    qkv = jnp.dot(xn.astype(wqkv_ref.dtype), wqkv_ref[...],
                  preferred_element_type=jnp.float32) + bqkv_ref[...]          # (S, 3E)

    # ---- head-major (H, S, D) views; 1/sqrt(D) already folded into Wq / bq in the wrapper ----
    # NOTE: per-head lane width D (= E/H) is intrinsically < 128 at this config; heads are
    # batched into single einsums so the softmax / score work is issued as few wide ops.
    q = jnp.stack([qkv[:, h * D:(h + 1) * D] for h in range(H)], axis=0)
    k = jnp.stack([qkv[:, E + h * D:E + (h + 1) * D] for h in range(H)], axis=0)
    v = jnp.stack([qkv[:, 2 * E + h * D:2 * E + (h + 1) * D] for h in range(H)], axis=0)

    # ---- batched attention over heads (scores in f32) ----
    # TODO(synk): for large S, switch to an online-softmax (flash) loop over K/V tiles.
    s = jnp.einsum('hsd,htd->hst', q, k, preferred_element_type=jnp.float32)   # (H, S, S)
    s = s - jnp.max(s, axis=-1, keepdims=True)
    p = jnp.exp(s)
    p = p * pl.reciprocal(jnp.sum(p, axis=-1, keepdims=True), approx=True)
    # TODO(synk): attention-prob dropout (p=0.1) treated as identity (eval/inference mode).
    ctx = jnp.einsum('hst,htd->hsd', p, v, preferred_element_type=jnp.float32)  # (H, S, D)

    # ---- output projection: re-pack heads onto the lane dim, single (S,E)@(E,E) matmul ----
    ctx_flat = jnp.concatenate([ctx[h] for h in range(H)], axis=1)             # (S, E)
    attn = jnp.dot(ctx_flat.astype(wo_ref.dtype), wo_ref[...],
                   preferred_element_type=jnp.float32) + bo_ref[...]

    res1 = x + attn                                                  # residual 1

    # ---- LayerNorm 2 + MLP (hidden dim chunked so the GELU intermediate stays O(S*chunk)) ----
    h2 = _layernorm(res1, ln2_g_ref[...], ln2_b_ref[...]).astype(w1_ref.dtype)
    mlp_out = jnp.zeros((S, E), jnp.float32)
    for c0 in range(0, MLP, mlp_chunk):
        c1 = min(c0 + mlp_chunk, MLP)
        g = jnp.dot(h2, w1_ref[:, c0:c1],
                    preferred_element_type=jnp.float32) + b1_ref[:, c0:c1]
        g = _gelu_exact(g)
        mlp_out = mlp_out + jnp.dot(g.astype(w2_ref.dtype), w2_ref[c0:c1, :],
                                    preferred_element_type=jnp.float32)
    # TODO(synk): MLP-output dropout (p=0.1) treated as identity (eval/inference mode).

    o_ref[0] = res1 + mlp_out + b2_ref[...]


def transformer_block(x, params, num_heads, *,
                      matmul_dtype=jnp.bfloat16, mlp_chunk=512):
    """x: (S, B, E) float32, PyTorch seq-first layout. Returns (S, B, E) float32."""
    S, B, E = x.shape
    H = num_heads
    D = E // H
    MLP = params["w1"].shape[0]
    scale = 1.0 / (D ** 0.5)

    # Fold the 1/sqrt(D) attention scale into the Q slice of the fused QKV weight + bias.
    qscale = jnp.concatenate([jnp.full((E,), scale, jnp.float32),
                              jnp.ones((2 * E,), jnp.float32)])
    wqkv_t = (params["in_proj_w"] * qscale[:, None]).T.astype(matmul_dtype)   # (E, 3E)
    bqkv = (params["in_proj_b"] * qscale).reshape(1, 3 * E).astype(jnp.float32)

    wo_t = params["out_proj_w"].T.astype(matmul_dtype)                        # (E, E)
    bo = params["out_proj_b"].reshape(1, E).astype(jnp.float32)
    w1_t = params["w1"].T.astype(matmul_dtype)                                # (E, MLP)
    b1 = params["b1"].reshape(1, MLP).astype(jnp.float32)
    w2_t = params["w2"].T.astype(matmul_dtype)                                # (MLP, E)
    b2 = params["b2"].reshape(1, E).astype(jnp.float32)
    ln1_g = params["ln1_g"].reshape(1, E).astype(jnp.float32)
    ln1_b = params["ln1_b"].reshape(1, E).astype(jnp.float32)
    ln2_g = params["ln2_g"].reshape(1, E).astype(jnp.float32)
    ln2_b = params["ln2_b"].reshape(1, E).astype(jnp.float32)

    xb = jnp.transpose(x, (1, 0, 2))                                          # (B, S, E)

    args = (xb, ln1_g, ln1_b, wqkv_t, bqkv, wo_t, bo, ln2_g, ln2_b,
            w1_t, b1, w2_t, b2)

    def _const_spec(a):
        n = a.ndim
        return pl.BlockSpec(a.shape, lambda b, n=n: (0,) * n)   # VMEM-resident across steps

    in_specs = ([pl.BlockSpec((1, S, E), lambda b: (b, 0, 0))]
                + [_const_spec(a) for a in args[1:]])
    out_specs = pl.BlockSpec((1, S, E), lambda b: (b, 0, 0))

    kernel = functools.partial(_transformer_block_kernel, H, min(mlp_chunk, MLP))
    out = pl.pallas_call(
        kernel,
        grid=(B,),                                       # batch axis: pipelined + megacore
        in_specs=in_specs,
        out_specs=out_specs,
        out_shape=jax.ShapeDtypeStruct((B, S, E), jnp.float32),
        compiler_params=pltpu.CompilerParams(
            dimension_semantics=("parallel",),           # v7x: shard batches over 2 TCs
            vmem_limit_bytes=32 * 1024 * 1024),          # explicit; safe on v5e/v6e/v7x
    )(*args)
    return jnp.transpose(out, (1, 0, 2))                 # back to (S, B, E)


def init_params(key, E, MLP):
    ks = jax.random.split(key, 8)
    std = 0.02
    n = lambda k, shape: std * jax.random.normal(k, shape, jnp.float32)
    return {
        "ln1_g": jnp.ones((E,), jnp.float32),
        "ln1_b": jnp.zeros((E,), jnp.float32),
        "in_proj_w": n(ks[0], (3 * E, E)),
        "in_proj_b": n(ks[1], (3 * E,)),
        "out_proj_w": n(ks[2], (E, E)),
        "out_proj_b": n(ks[3], (E,)),
        "ln2_g": jnp.ones((E,), jnp.float32),
        "ln2_b": jnp.zeros((E,), jnp.float32),
        "w1": n(ks[4], (MLP, E)),
        "b1": n(ks[5], (MLP,)),
        "w2": n(ks[6], (E, MLP)),
        "b2": n(ks[7], (E,)),
    }


def reference(x, params, num_heads):
    """Pure-JAX (f32) re-implementation of the PyTorch forward (eval mode)."""
    S, B, E = x.shape
    H = num_heads
    D = E // H

    def ln(v, g, b, eps=1e-5):
        mu = jnp.mean(v, -1, keepdims=True)
        var = jnp.mean((v - mu) ** 2, -1, keepdims=True)
        return (v - mu) * jax.lax.rsqrt(var + eps) * g + b

    xn = ln(x, params["ln1_g"], params["ln1_b"])
    qkv = jnp.einsum("sbe,fe->sbf", xn, params["in_proj_w"]) + params["in_proj_b"]
    q, k, v = qkv[..., :E], qkv[..., E:2 * E], qkv[..., 2 * E:]
    q = q.reshape(S, B, H, D) / (D ** 0.5)
    k = k.reshape(S, B, H, D)
    v = v.reshape(S, B, H, D)
    s = jnp.einsum("sbhd,tbhd->bhst", q, k)
    p = jax.nn.softmax(s, axis=-1)
    ctx = jnp.einsum("bhst,tbhd->sbhd", p, v).reshape(S, B, E)
    attn = jnp.einsum("sbe,fe->sbf", ctx, params["out_proj_w"]) + params["out_proj_b"]
    x1 = x + attn
    h = ln(x1, params["ln2_g"], params["ln2_b"])
    h = jnp.einsum("sbe,me->sbm", h, params["w1"]) + params["b1"]
    h = 0.5 * h * (1.0 + jax.scipy.special.erf(h * 0.7071067811865476))
    h = jnp.einsum("sbm,em->sbe", h, params["w2"]) + params["b2"]
    return x1 + h


if __name__ == "__main__":
    S, B, E, H, MLP = 8, 2, 32, 4, 64
    key = jax.random.PRNGKey(0)
    kx, kp = jax.random.split(key)
    x = jax.random.normal(kx, (S, B, E), jnp.float32)
    params = init_params(kp, E, MLP)

    out = transformer_block(x, params, H)
    out = jax.block_until_ready(out)
    assert out.shape == (S, B, E)

    ref = reference(x, params, H)
    err = float(jnp.max(jnp.abs(out - ref)))
    # bf16 matmul operands (f32 accumulation) => slightly looser tolerance than pure f32.
    assert err < 5e-3, f"mismatch vs reference: {err}"
    print("KERNEL_OK")
</pallas_src>

<mosaic_0001>
module attributes {stable_mosaic.version = 11 : i64} {
  func.func @_transformer_block_kernel(%arg0: i32, %arg1: memref<1x8x32xf32, #tpu.memory_space<vmem>>, %arg2: memref<1x32xf32, #tpu.memory_space<vmem>>, %arg3: memref<1x32xf32, #tpu.memory_space<vmem>>, %arg4: memref<32x96xbf16, #tpu.memory_space<vmem>>, %arg5: memref<1x96xf32, #tpu.memory_space<vmem>>, %arg6: memref<32x32xbf16, #tpu.memory_space<vmem>>, %arg7: memref<1x32xf32, #tpu.memory_space<vmem>>, %arg8: memref<1x32xf32, #tpu.memory_space<vmem>>, %arg9: memref<1x32xf32, #tpu.memory_space<vmem>>, %arg10: memref<32x64xbf16, #tpu.memory_space<vmem>>, %arg11: memref<1x64xf32, #tpu.memory_space<vmem>>, %arg12: memref<64x32xbf16, #tpu.memory_space<vmem>>, %arg13: memref<1x32xf32, #tpu.memory_space<vmem>>, %arg14: memref<1x8x32xf32, #tpu.memory_space<vmem>>) attributes {dimension_semantics = [#tpu.dimension_semantics<parallel>], iteration_bounds = array<i64: 2>, scalar_prefetch = 0 : i64, scratch_operands = 0 : i64, tpu.core_type = #tpu.core_type<tc>, window_params = [{transform_indices = @transform_0, window_bounds = array<i64: 1, 8, 32>}, {pipeline_mode = #tpu.pipeline_mode<synchronous>, transform_indices = @transform_1, window_bounds = array<i64: 1, 32>}, {pipeline_mode = #tpu.pipeline_mode<synchronous>, transform_indices = @transform_2, window_bounds = array<i64: 1, 32>}, {pipeline_mode = #tpu.pipeline_mode<synchronous>, transform_indices = @transform_3, window_bounds = array<i64: 32, 96>}, {pipeline_mode = #tpu.pipeline_mode<synchronous>, transform_indices = @transform_4, window_bounds = array<i64: 1, 96>}, {pipeline_mode = #tpu.pipeline_mode<synchronous>, transform_indices = @transform_5, window_bounds = array<i64: 32, 32>}, {pipeline_mode = #tpu.pipeline_mode<synchronous>, transform_indices = @transform_6, window_bounds = array<i64: 1, 32>}, {pipeline_mode = #tpu.pipeline_mode<synchronous>, transform_indices = @transform_7, window_bounds = array<i64: 1, 32>}, {pipeline_mode = #tpu.pipeline_mode<synchronous>, transform_indices = @transform_8, window_bounds = array<i64: 1, 32>}, {pipeline_mode = #tpu.pipeline_mode<synchronous>, transform_indices = @transform_9, window_bounds = array<i64: 32, 64>}, {pipeline_mode = #tpu.pipeline_mode<synchronous>, transform_indices = @transform_10, window_bounds = array<i64: 1, 64>}, {pipeline_mode = #tpu.pipeline_mode<synchronous>, transform_indices = @transform_11, window_bounds = array<i64: 64, 32>}, {pipeline_mode = #tpu.pipeline_mode<synchronous>, transform_indices = @transform_12, window_bounds = array<i64: 1, 32>}, {transform_indices = @transform_13, window_bounds = array<i64: 1, 8, 32>}]} {
    %c0 = arith.constant 0 : index
    %c0_0 = arith.constant 0 : index
    %c0_1 = arith.constant 0 : index
    %0 = vector.load %arg1[%c0, %c0_0, %c0_1] : memref<1x8x32xf32, #tpu.memory_space<vmem>>, vector<1x8x32xf32>
    %1 = vector.shape_cast %0 : vector<1x8x32xf32> to vector<8x32xf32>
    %c0_2 = arith.constant 0 : index
    %c0_3 = arith.constant 0 : index
    %2 = vector.load %arg2[%c0_2, %c0_3] : memref<1x32xf32, #tpu.memory_space<vmem>>, vector<1x32xf32>
    %c0_4 = arith.constant 0 : index
    %c0_5 = arith.constant 0 : index
    %3 = vector.load %arg3[%c0_4, %c0_5] : memref<1x32xf32, #tpu.memory_space<vmem>>, vector<1x32xf32>
    %cst = arith.constant dense<0.000000e+00> : vector<8xf32>
    %4 = vector.multi_reduction <add>, %1, %cst [1] : vector<8x32xf32> to vector<8xf32>
    %5 = vector.shape_cast %4 : vector<8xf32> to vector<8x1xf32>
    %cst_6 = arith.constant 3.200000e+01 : f32
    %6 = vector.broadcast %cst_6 : f32 to vector<8x1xf32>
    %7 = arith.divf %5, %6 : vector<8x1xf32>
    %8 = vector.broadcast %7 : vector<8x1xf32> to vector<8x32xf32>
    %9 = arith.subf %1, %8 : vector<8x32xf32>
    %10 = arith.mulf %9, %9 : vector<8x32xf32>
    %cst_7 = arith.constant dense<0.000000e+00> : vector<8xf32>
    %11 = vector.multi_reduction <add>, %10, %cst_7 [1] : vector<8x32xf32> to vector<8xf32>
    %12 = vector.shape_cast %11 : vector<8xf32> to vector<8x1xf32>
    %cst_8 = arith.constant 3.200000e+01 : f32
    %13 = vector.broadcast %cst_8 : f32 to vector<8x1xf32>
    %14 = arith.divf %12, %13 : vector<8x1xf32>
    %15 = vector.broadcast %7 : vector<8x1xf32> to vector<8x32xf32>
    %16 = arith.subf %1, %15 : vector<8x32xf32>
    %cst_9 = arith.constant 9.99999974E-6 : f32
    %17 = vector.broadcast %cst_9 : f32 to vector<8x1xf32>
    %18 = arith.addf %14, %17 : vector<8x1xf32>
    %19 = math.rsqrt %18 : vector<8x1xf32>
    %20 = vector.broadcast %19 : vector<8x1xf32> to vector<8x32xf32>
    %21 = arith.mulf %16, %20 : vector<8x32xf32>
    %22 = vector.broadcast %2 : vector<1x32xf32> to vector<8x32xf32>
    %23 = arith.mulf %21, %22 : vector<8x32xf32>
    %24 = vector.broadcast %3 : vector<1x32xf32> to vector<8x32xf32>
    %25 = arith.addf %23, %24 : vector<8x32xf32>
    %26 = arith.truncf %25 : vector<8x32xf32> to vector<8x32xbf16>
    %c0_10 = arith.constant 0 : index
    %c0_11 = arith.constant 0 : index
    %27 = vector.load %arg4[%c0_10, %c0_11] : memref<32x96xbf16, #tpu.memory_space<vmem>>, vector<32x96xbf16>
    %cst_12 = arith.constant dense<0.000000e+00> : vector<8x96xf32>
    %28 = tpu.matmul %26, %27, %cst_12 {dimension_numbers = #tpu.dot_dimension_numbers<[1], [0], [0], [1], [0, 0, 1, 1], [], []>} : vector<8x32xbf16>, vector<32x96xbf16>, vector<8x96xf32> -> vector<8x96xf32>
    %c0_13 = arith.constant 0 : index
    %c0_14 = arith.constant 0 : index
    %29 = vector.load %arg5[%c0_13, %c0_14] : memref<1x96xf32, #tpu.memory_space<vmem>>, vector<1x96xf32>
    %30 = vector.broadcast %29 : vector<1x96xf32> to vector<8x96xf32>
    %31 = arith.addf %28, %30 : vector<8x96xf32>
    %32 = vector.extract_strided_slice %31 {offsets = [0, 0], sizes = [8, 8], strides = [1, 1]} : vector<8x96xf32> to vector<8x8xf32>
    %33 = vector.extract_strided_slice %31 {offsets = [0, 8], sizes = [8, 8], strides = [1, 1]} : vector<8x96xf32> to vector<8x8xf32>
    %34 = vector.extract_strided_slice %31 {offsets = [0, 16], sizes = [8, 8], strides = [1, 1]} : vector<8x96xf32> to vector<8x8xf32>
    %35 = vector.extract_strided_slice %31 {offsets = [0, 24], sizes = [8, 8], strides = [1, 1]} : vector<8x96xf32> to vector<8x8xf32>
    %36 = vector.shape_cast %32 : vector<8x8xf32> to vector<1x8x8xf32>
    %37 = vector.shape_cast %33 : vector<8x8xf32> to vector<1x8x8xf32>
    %38 = vector.shape_cast %34 : vector<8x8xf32> to vector<1x8x8xf32>
    %39 = vector.shape_cast %35 : vector<8x8xf32> to vector<1x8x8xf32>
    %40 = tpu.concatenate %36, %37, %38, %39 in 0 : vector<1x8x8xf32>, vector<1x8x8xf32>, vector<1x8x8xf32>, vector<1x8x8xf32> -> vector<4x8x8xf32>
    %41 = vector.extract_strided_slice %31 {offsets = [0, 32], sizes = [8, 8], strides = [1, 1]} : vector<8x96xf32> to vector<8x8xf32>
    %42 = vector.extract_strided_slice %31 {offsets = [0, 40], sizes = [8, 8], strides = [1, 1]} : vector<8x96xf32> to vector<8x8xf32>
    %43 = vector.extract_strided_slice %31 {offsets = [0, 48], sizes = [8, 8], strides = [1, 1]} : vector<8x96xf32> to vector<8x8xf32>
    %44 = vector.extract_strided_slice %31 {offsets = [0, 56], sizes = [8, 8], strides = [1, 1]} : vector<8x96xf32> to vector<8x8xf32>
    %45 = vector.shape_cast %41 : vector<8x8xf32> to vector<1x8x8xf32>
    %46 = vector.shape_cast %42 : vector<8x8xf32> to vector<1x8x8xf32>
    %47 = vector.shape_cast %43 : vector<8x8xf32> to vector<1x8x8xf32>
    %48 = vector.shape_cast %44 : vector<8x8xf32> to vector<1x8x8xf32>
    %49 = tpu.concatenate %45, %46, %47, %48 in 0 : vector<1x8x8xf32>, vector<1x8x8xf32>, vector<1x8x8xf32>, vector<1x8x8xf32> -> vector<4x8x8xf32>
    %50 = vector.extract_strided_slice %31 {offsets = [0, 64], sizes = [8, 8], strides = [1, 1]} : vector<8x96xf32> to vector<8x8xf32>
    %51 = vector.extract_strided_slice %31 {offsets = [0, 72], sizes = [8, 8], strides = [1, 1]} : vector<8x96xf32> to vector<8x8xf32>
    %52 = vector.extract_strided_slice %31 {offsets = [0, 80], sizes = [8, 8], strides = [1, 1]} : vector<8x96xf32> to vector<8x8xf32>
    %53 = vector.extract_strided_slice %31 {offsets = [0, 88], sizes = [8, 8], strides = [1, 1]} : vector<8x96xf32> to vector<8x8xf32>
    %54 = vector.shape_cast %50 : vector<8x8xf32> to vector<1x8x8xf32>
    %55 = vector.shape_cast %51 : vector<8x8xf32> to vector<1x8x8xf32>
    %56 = vector.shape_cast %52 : vector<8x8xf32> to vector<1x8x8xf32>
    %57 = vector.shape_cast %53 : vector<8x8xf32> to vector<1x8x8xf32>
    %58 = tpu.concatenate %54, %55, %56, %57 in 0 : vector<1x8x8xf32>, vector<1x8x8xf32>, vector<1x8x8xf32>, vector<1x8x8xf32> -> vector<4x8x8xf32>
    "tpu.trace_start"() <{level = 10 : i32, message = "hsd,htd->hst"}> : () -> ()
    %cst_15 = arith.constant dense<0.000000e+00> : vector<4x8x8xf32>
    %59 = tpu.matmul %40, %49, %cst_15 {dimension_numbers = #tpu.dot_dimension_numbers<[2], [2], [1], [1], [0, 0, 0, 1, 1, 1], [0], [0]>} : vector<4x8x8xf32>, vector<4x8x8xf32>, vector<4x8x8xf32> -> vector<4x8x8xf32>
    "tpu.trace_stop"() : () -> ()
    %cst_16 = arith.constant dense<0xFF800000> : vector<4x8xf32>
    %60 = vector.multi_reduction <maximumf>, %59, %cst_16 [2] : vector<4x8x8xf32> to vector<4x8xf32>
    %61 = vector.shape_cast %60 : vector<4x8xf32> to vector<4x8x1xf32>
    %62 = vector.broadcast %61 : vector<4x8x1xf32> to vector<4x8x8xf32>
    %63 = arith.subf %59, %62 : vector<4x8x8xf32>
    %64 = math.exp %63 : vector<4x8x8xf32>
    %cst_17 = arith.constant dense<0.000000e+00> : vector<4x8xf32>
    %65 = vector.multi_reduction <add>, %64, %cst_17 [2] : vector<4x8x8xf32> to vector<4x8xf32>
    %66 = vector.shape_cast %65 : vector<4x8xf32> to vector<4x8x1xf32>
    %67 = tpu.reciprocal %66 {approx = true} : vector<4x8x1xf32> -> vector<4x8x1xf32>
    %68 = vector.broadcast %67 : vector<4x8x1xf32> to vector<4x8x8xf32>
    %69 = arith.mulf %64, %68 : vector<4x8x8xf32>
    "tpu.trace_start"() <{level = 10 : i32, message = "hst,htd->hsd"}> : () -> ()
    %cst_18 = arith.constant dense<0.000000e+00> : vector<4x8x8xf32>
    %70 = tpu.matmul %69, %58, %cst_18 {dimension_numbers = #tpu.dot_dimension_numbers<[2], [1], [1], [2], [0, 0, 0, 1, 1, 2], [0], [0]>} : vector<4x8x8xf32>, vector<4x8x8xf32>, vector<4x8x8xf32> -> vector<4x8x8xf32>
    "tpu.trace_stop"() : () -> ()
    %71 = vector.extract_strided_slice %70 {offsets = [0, 0, 0], sizes = [1, 8, 8], strides = [1, 1, 1]} : vector<4x8x8xf32> to vector<1x8x8xf32>
    %72 = vector.shape_cast %71 : vector<1x8x8xf32> to vector<8x8xf32>
    %73 = vector.extract_strided_slice %70 {offsets = [1, 0, 0], sizes = [1, 8, 8], strides = [1, 1, 1]} : vector<4x8x8xf32> to vector<1x8x8xf32>
    %74 = vector.shape_cast %73 : vector<1x8x8xf32> to vector<8x8xf32>
    %75 = vector.extract_strided_slice %70 {offsets = [2, 0, 0], sizes = [1, 8, 8], strides = [1, 1, 1]} : vector<4x8x8xf32> to vector<1x8x8xf32>
    %76 = vector.shape_cast %75 : vector<1x8x8xf32> to vector<8x8xf32>
    %77 = vector.extract_strided_slice %70 {offsets = [3, 0, 0], sizes = [1, 8, 8], strides = [1, 1, 1]} : vector<4x8x8xf32> to vector<1x8x8xf32>
    %78 = vector.shape_cast %77 : vector<1x8x8xf32> to vector<8x8xf32>
    %79 = tpu.concatenate %72, %74, %76, %78 in 1 : vector<8x8xf32>, vector<8x8xf32>, vector<8x8xf32>, vector<8x8xf32> -> vector<8x32xf32>
    %80 = arith.truncf %79 : vector<8x32xf32> to vector<8x32xbf16>
    %c0_19 = arith.constant 0 : index
    %c0_20 = arith.constant 0 : index
    %81 = vector.load %arg6[%c0_19, %c0_20] : memref<32x32xbf16, #tpu.memory_space<vmem>>, vector<32x32xbf16>
    %cst_21 = arith.constant dense<0.000000e+00> : vector<8x32xf32>
    %82 = tpu.matmul %80, %81, %cst_21 {dimension_numbers = #tpu.dot_dimension_numbers<[1], [0], [0], [1], [0, 0, 1, 1], [], []>} : vector<8x32xbf16>, vector<32x32xbf16>, vector<8x32xf32> -> vector<8x32xf32>
    %c0_22 = arith.constant 0 : index
    %c0_23 = arith.constant 0 : index
    %83 = vector.load %arg7[%c0_22, %c0_23] : memref<1x32xf32, #tpu.memory_space<vmem>>, vector<1x32xf32>
    %84 = vector.broadcast %83 : vector<1x32xf32> to vector<8x32xf32>
    %85 = arith.addf %82, %84 : vector<8x32xf32>
    %86 = arith.addf %1, %85 : vector<8x32xf32>
    %c0_24 = arith.constant 0 : index
    %c0_25 = arith.constant 0 : index
    %87 = vector.load %arg8[%c0_24, %c0_25] : memref<1x32xf32, #tpu.memory_space<vmem>>, vector<1x32xf32>
    %c0_26 = arith.constant 0 : index
    %c0_27 = arith.constant 0 : index
    %88 = vector.load %arg9[%c0_26, %c0_27] : memref<1x32xf32, #tpu.memory_space<vmem>>, vector<1x32xf32>
    %cst_28 = arith.constant dense<0.000000e+00> : vector<8xf32>
    %89 = vector.multi_reduction <add>, %86, %cst_28 [1] : vector<8x32xf32> to vector<8xf32>
    %90 = vector.shape_cast %89 : vector<8xf32> to vector<8x1xf32>
    %cst_29 = arith.constant 3.200000e+01 : f32
    %91 = vector.broadcast %cst_29 : f32 to vector<8x1xf32>
    %92 = arith.divf %90, %91 : vector<8x1xf32>
    %93 = vector.broadcast %92 : vector<8x1xf32> to vector<8x32xf32>
    %94 = arith.subf %86, %93 : vector<8x32xf32>
    %95 = arith.mulf %94, %94 : vector<8x32xf32>
    %cst_30 = arith.constant dense<0.000000e+00> : vector<8xf32>
    %96 = vector.multi_reduction <add>, %95, %cst_30 [1] : vector<8x32xf32> to vector<8xf32>
    %97 = vector.shape_cast %96 : vector<8xf32> to vector<8x1xf32>
    %cst_31 = arith.constant 3.200000e+01 : f32
    %98 = vector.broadcast %cst_31 : f32 to vector<8x1xf32>
    %99 = arith.divf %97, %98 : vector<8x1xf32>
    %100 = vector.broadcast %92 : vector<8x1xf32> to vector<8x32xf32>
    %101 = arith.subf %86, %100 : vector<8x32xf32>
    %cst_32 = arith.constant 9.99999974E-6 : f32
    %102 = vector.broadcast %cst_32 : f32 to vector<8x1xf32>
    %103 = arith.addf %99, %102 : vector<8x1xf32>
    %104 = math.rsqrt %103 : vector<8x1xf32>
    %105 = vector.broadcast %104 : vector<8x1xf32> to vector<8x32xf32>
    %106 = arith.mulf %101, %105 : vector<8x32xf32>
    %107 = vector.broadcast %87 : vector<1x32xf32> to vector<8x32xf32>
    %108 = arith.mulf %106, %107 : vector<8x32xf32>
    %109 = vector.broadcast %88 : vector<1x32xf32> to vector<8x32xf32>
    %110 = arith.addf %108, %109 : vector<8x32xf32>
    %111 = arith.truncf %110 : vector<8x32xf32> to vector<8x32xbf16>
    %cst_33 = arith.constant 0.000000e+00 : f32
    %112 = vector.broadcast %cst_33 : f32 to vector<8x32xf32>
    %c0_34 = arith.constant 0 : index
    %c0_35 = arith.constant 0 : index
    %113 = vector.load %arg10[%c0_34, %c0_35] : memref<32x64xbf16, #tpu.memory_space<vmem>>, vector<32x64xbf16>
    %cst_36 = arith.constant dense<0.000000e+00> : vector<8x64xf32>
    %114 = tpu.matmul %111, %113, %cst_36 {dimension_numbers = #tpu.dot_dimension_numbers<[1], [0], [0], [1], [0, 0, 1, 1], [], []>} : vector<8x32xbf16>, vector<32x64xbf16>, vector<8x64xf32> -> vector<8x64xf32>
    %c0_37 = arith.constant 0 : index
    %c0_38 = arith.constant 0 : index
    %115 = vector.load %arg11[%c0_37, %c0_38] : memref<1x64xf32, #tpu.memory_space<vmem>>, vector<1x64xf32>
    %116 = vector.broadcast %115 : vector<1x64xf32> to vector<8x64xf32>
    %117 = arith.addf %114, %116 : vector<8x64xf32>
    %cst_39 = arith.constant 5.000000e-01 : f32
    %118 = vector.broadcast %cst_39 : f32 to vector<8x64xf32>
    %119 = arith.mulf %118, %117 : vector<8x64xf32>
    %cst_40 = arith.constant 0.707106769 : f32
    %120 = vector.broadcast %cst_40 : f32 to vector<8x64xf32>
    %121 = arith.mulf %117, %120 : vector<8x64xf32>
    %cst_41 = arith.constant 0.000000e+00 : f32
    %122 = vector.broadcast %cst_41 : f32 to vector<8x64xf32>
    %123 = arith.cmpf oge, %121, %122 : vector<8x64xf32>
    %cst_42 = arith.constant 1.000000e+00 : f32
    %cst_43 = arith.constant -1.000000e+00 : f32
    %124 = vector.broadcast %cst_42 : f32 to vector<8x64xf32>
    %125 = vector.broadcast %cst_43 : f32 to vector<8x64xf32>
    %126 = arith.select %123, %124, %125 : vector<8x64xi1>, vector<8x64xf32>
    %127 = math.absf %121 : vector<8x64xf32>
    %cst_44 = arith.constant 0.327591091 : f32
    %128 = vector.broadcast %cst_44 : f32 to vector<8x64xf32>
    %129 = arith.mulf %128, %127 : vector<8x64xf32>
    %cst_45 = arith.constant 1.000000e+00 : f32
    %130 = vector.broadcast %cst_45 : f32 to vector<8x64xf32>
    %131 = arith.addf %130, %129 : vector<8x64xf32>
    %cst_46 = arith.constant 1.000000e+00 : f32
    %132 = vector.broadcast %cst_46 : f32 to vector<8x64xf32>
    %133 = arith.divf %132, %131 : vector<8x64xf32>
    %cst_47 = arith.constant 1.06140542 : f32
    %134 = vector.broadcast %cst_47 : f32 to vector<8x64xf32>
    %135 = arith.mulf %134, %133 : vector<8x64xf32>
    %cst_48 = arith.constant -1.45315206 : f32
    %136 = vector.broadcast %cst_48 : f32 to vector<8x64xf32>
    %137 = arith.addf %135, %136 : vector<8x64xf32>
    %138 = arith.mulf %137, %133 : vector<8x64xf32>
    %cst_49 = arith.constant 1.42141378 : f32
    %139 = vector.broadcast %cst_49 : f32 to vector<8x64xf32>
    %140 = arith.addf %138, %139 : vector<8x64xf32>
    %141 = arith.mulf %140, %133 : vector<8x64xf32>
    %cst_50 = arith.constant -0.284496725 : f32
    %142 = vector.broadcast %cst_50 : f32 to vector<8x64xf32>
    %143 = arith.addf %141, %142 : vector<8x64xf32>
    %144 = arith.mulf %143, %133 : vector<8x64xf32>
    %cst_51 = arith.constant 0.254829586 : f32
    %145 = vector.broadcast %cst_51 : f32 to vector<8x64xf32>
    %146 = arith.addf %144, %145 : vector<8x64xf32>
    %147 = arith.mulf %146, %133 : vector<8x64xf32>
    %cst_52 = arith.constant 0.000000e+00 : f32
    %148 = vector.broadcast %cst_52 : f32 to vector<8x64xf32>
    %149 = arith.subf %148, %127 : vector<8x64xf32>
    %150 = arith.mulf %149, %127 : vector<8x64xf32>
    %151 = math.exp %150 : vector<8x64xf32>
    %152 = arith.mulf %147, %151 : vector<8x64xf32>
    %cst_53 = arith.constant 1.000000e+00 : f32
    %153 = vector.broadcast %cst_53 : f32 to vector<8x64xf32>
    %154 = arith.subf %153, %152 : vector<8x64xf32>
    %155 = arith.mulf %126, %154 : vector<8x64xf32>
    %cst_54 = arith.constant 1.000000e+00 : f32
    %156 = vector.broadcast %cst_54 : f32 to vector<8x64xf32>
    %157 = arith.addf %156, %155 : vector<8x64xf32>
    %158 = arith.mulf %119, %157 : vector<8x64xf32>
    %159 = arith.truncf %158 : vector<8x64xf32> to vector<8x64xbf16>
    %c0_55 = arith.constant 0 : index
    %c0_56 = arith.constant 0 : index
    %160 = vector.load %arg12[%c0_55, %c0_56] : memref<64x32xbf16, #tpu.memory_space<vmem>>, vector<64x32xbf16>
    %cst_57 = arith.constant dense<0.000000e+00> : vector<8x32xf32>
    %161 = tpu.matmul %159, %160, %cst_57 {dimension_numbers = #tpu.dot_dimension_numbers<[1], [0], [0], [1], [0, 0, 1, 1], [], []>} : vector<8x64xbf16>, vector<64x32xbf16>, vector<8x32xf32> -> vector<8x32xf32>
    %162 = arith.addf %112, %161 : vector<8x32xf32>
    %163 = arith.addf %86, %162 : vector<8x32xf32>
    %c0_58 = arith.constant 0 : index
    %c0_59 = arith.constant 0 : index
    %164 = vector.load %arg13[%c0_58, %c0_59] : memref<1x32xf32, #tpu.memory_space<vmem>>, vector<1x32xf32>
    %165 = vector.broadcast %164 : vector<1x32xf32> to vector<8x32xf32>
    %166 = arith.addf %163, %165 : vector<8x32xf32>
    %c0_60 = arith.constant 0 : index
    %c0_61 = arith.constant 0 : index
    %c0_62 = arith.constant 0 : index
    %167 = vector.load %arg14[%c0_60, %c0_61, %c0_62] : memref<1x8x32xf32, #tpu.memory_space<vmem>>, vector<1x8x32xf32>
    %168 = vector.shape_cast %167 : vector<1x8x32xf32> to vector<8x32xf32>
    %169 = vector.shape_cast %166 : vector<8x32xf32> to vector<1x8x32xf32>
    tpu.vector_store %arg14[%c0_60, %c0_61, %c0_62], %169 {strides = array<i32>} : memref<1x8x32xf32, #tpu.memory_space<vmem>>, vector<1x8x32xf32>,
    return
  }
  func.func @transform_0(%arg0: i32) -> (i32, i32, i32) {
    %c0_i32 = arith.constant 0 : i32
    %c0_i32_0 = arith.constant 0 : i32
    %c0_i32_1 = arith.constant 0 : i32
    return %arg0, %c0_i32, %c0_i32_0 : i32, i32, i32
  }
  func.func @transform_1(%arg0: i32) -> (i32, i32) {
    %c0_i32 = arith.constant 0 : i32
    %c0_i32_0 = arith.constant 0 : i32
    %c0_i32_1 = arith.constant 0 : i32
    return %c0_i32, %c0_i32_0 : i32, i32
  }
  func.func @transform_2(%arg0: i32) -> (i32, i32) {
    %c0_i32 = arith.constant 0 : i32
    %c0_i32_0 = arith.constant 0 : i32
    %c0_i32_1 = arith.constant 0 : i32
    return %c0_i32, %c0_i32_0 : i32, i32
  }
  func.func @transform_3(%arg0: i32) -> (i32, i32) {
    %c0_i32 = arith.constant 0 : i32
    %c0_i32_0 = arith.constant 0 : i32
    %c0_i32_1 = arith.constant 0 : i32
    return %c0_i32, %c0_i32_0 : i32, i32
  }
  func.func @transform_4(%arg0: i32) -> (i32, i32) {
    %c0_i32 = arith.constant 0 : i32
    %c0_i32_0 = arith.constant 0 : i32
    %c0_i32_1 = arith.constant 0 : i32
    return %c0_i32, %c0_i32_0 : i32, i32
  }
  func.func @transform_5(%arg0: i32) -> (i32, i32) {
    %c0_i32 = arith.constant 0 : i32
    %c0_i32_0 = arith.constant 0 : i32
    %c0_i32_1 = arith.constant 0 : i32
    return %c0_i32, %c0_i32_0 : i32, i32
  }
  func.func @transform_6(%arg0: i32) -> (i32, i32) {
    %c0_i32 = arith.constant 0 : i32
    %c0_i32_0 = arith.constant 0 : i32
    %c0_i32_1 = arith.constant 0 : i32
    return %c0_i32, %c0_i32_0 : i32, i32
  }
  func.func @transform_7(%arg0: i32) -> (i32, i32) {
    %c0_i32 = arith.constant 0 : i32
    %c0_i32_0 = arith.constant 0 : i32
    %c0_i32_1 = arith.constant 0 : i32
    return %c0_i32, %c0_i32_0 : i32, i32
  }
  func.func @transform_8(%arg0: i32) -> (i32, i32) {
    %c0_i32 = arith.constant 0 : i32
    %c0_i32_0 = arith.constant 0 : i32
    %c0_i32_1 = arith.constant 0 : i32
    return %c0_i32, %c0_i32_0 : i32, i32
  }
  func.func @transform_9(%arg0: i32) -> (i32, i32) {
    %c0_i32 = arith.constant 0 : i32
    %c0_i32_0 = arith.constant 0 : i32
    %c0_i32_1 = arith.constant 0 : i32
    return %c0_i32, %c0_i32_0 : i32, i32
  }
  func.func @transform_10(%arg0: i32) -> (i32, i32) {
    %c0_i32 = arith.constant 0 : i32
    %c0_i32_0 = arith.constant 0 : i32
    %c0_i32_1 = arith.constant 0 : i32
    return %c0_i32, %c0_i32_0 : i32, i32
  }
  func.func @transform_11(%arg0: i32) -> (i32, i32) {
    %c0_i32 = arith.constant 0 : i32
    %c0_i32_0 = arith.constant 0 : i32
    %c0_i32_1 = arith.constant 0 : i32
    return %c0_i32, %c0_i32_0 : i32, i32
  }
  func.func @transform_12(%arg0: i32) -> (i32, i32) {
    %c0_i32 = arith.constant 0 : i32
    %c0_i32_0 = arith.constant 0 : i32
    %c0_i32_1 = arith.constant 0 : i32
    return %c0_i32, %c0_i32_0 : i32, i32
  }
  func.func @transform_13(%arg0: i32) -> (i32, i32, i32) {
    %c0_i32 = arith.constant 0 : i32
    %c0_i32_0 = arith.constant 0 : i32
    %c0_i32_1 = arith.constant 0 : i32
    return %arg0, %c0_i32, %c0_i32_0 : i32, i32, i32
  }
}

</mosaic_0001>

<llo_original>
// kernel: tpu_custom_call.1
$region0: #{tpu_custom_call.1}
  #allocation0 [shape = 'u32[]', space=smem, size = 0x4, offset = 0x4, fixed_abs, tag = 'smem constant byte address 0x4 - core index']
  #allocation1 [shape = 'u32[144,128]{1,0:T(1,128)}', space=vmem, size = 0x12000, scoped, tag = 'internal scratch']
  %s0 = inlined_call_operand.vmem [shape: f32[2,8,32], index: 0, kind: input, shape index: {}]
  %s1 = inlined_call_operand.vmem [shape: f32[1,32], index: 1, kind: input, shape index: {}]
  %s2 = inlined_call_operand.vmem [shape: f32[1,32], index: 2, kind: input, shape index: {}]
  %s3 = inlined_call_operand.vmem [shape: bf16[32,96], index: 3, kind: input, shape index: {}]
  %s4 = inlined_call_operand.vmem [shape: f32[1,96], index: 4, kind: input, shape index: {}]
  %s5 = inlined_call_operand.vmem [shape: bf16[32,32], index: 5, kind: input, shape index: {}]
  %s6 = inlined_call_operand.vmem [shape: f32[1,32], index: 6, kind: input, shape index: {}]
  %s7 = inlined_call_operand.hbm [shape: f32[1,32], index: 7, kind: input, shape index: {}]
  %s8 = inlined_call_operand.hbm [shape: f32[1,32], index: 8, kind: input, shape index: {}]
  %s9 = inlined_call_operand.hbm [shape: bf16[32,64], index: 9, kind: input, shape index: {}]
  %s10 = inlined_call_operand.hbm [shape: f32[1,64], index: 10, kind: input, shape index: {}]
  %s11 = inlined_call_operand.vmem [shape: bf16[64,32], index: 11, kind: input, shape index: {}]
  %s12 = inlined_call_operand.vmem [shape: f32[1,32], index: 12, kind: input, shape index: {}]
  %s13 = inlined_call_operand.hbm [shape: f32[2,8,32], index: 13, kind: output, shape index: {}]
  %s14 = sld [smem:[#allocation0]]
  $region101: #{tpu_custom_call.1} parent=0
    _
  %s16 = ssub.s32 1, %s14
  %s17 = scalar_select 0, %s16, %s14
  $region1: #{tpu_custom_call.1} parent=0
    #allocation2 [shape = 'u8[512]{0}', space=vmem, size = 0x400, scoped, tag = 'input window, operand 7, single buffered']
    #allocation3 [shape = 's32[2]{0}', space=sflag, size = 0x8, scoped, tag = 'scoped memory for tpu_custom_call.1']
    #allocation4 [shape = 's32[2]{0}', space=sflag, size = 0x8, scoped, tag = 'scoped memory for tpu_custom_call.1']
    #allocation5 [shape = 'u8[512]{0}', space=vmem, size = 0x400, scoped, tag = 'input window, operand 8, single buffered']
    #allocation6 [shape = 's32[1]{0}', space=sflag, size = 0x4, scoped, tag = 'scoped memory for tpu_custom_call.1']
    #allocation7 [shape = 'u8[8192]{0}', space=vmem, size = 0x2000, scoped, tag = 'input window, operand 9, single buffered']
    #allocation8 [shape = 'u8[512]{0}', space=vmem, size = 0x400, scoped, tag = 'input window, operand 10, single buffered']
    #allocation9 [shape = 's32[1]{0}', space=sflag, size = 0x4, scoped, tag = 'scoped memory for tpu_custom_call.1']
    #allocation10 [shape = 'u8[8192]{0}', space=vmem, size = 0x2000, scoped, tag = 'output window, operand 0']
    %18 = vsyncpa [#allocation3], 0
    %19 = vsyncpa [#allocation6], 0
    %20 = vsyncpa [#allocation9], 0
    %21 = vsyncpa [#allocation4], 0
    %s22 = scalar_lea.sflag [#allocation4], 1
    %23 = vsyncpa %s22, 0
    loop: start=0, step=1, limit=4
    $region2: #{tpu_custom_call.1} parent=1 // loop_pre_header
      _
    $region3: #{tpu_custom_call.1} parent=1 // loop_header
      %s25 = sphi 0, %s29
      %p26 = scmp.ge.s32.totalorder %s25, 4
      %s35 = sphi 0, %s37
      %s38 = sphi 0, %s35
      %s39 = sphi 0, %s38
      %s55 = sphi 0, %s39
      %s59 = sphi 0, %s59
      %s61 = sphi 0, %s59
      %s62 = sphi 0, %s61
      %s76 = sphi 0, %s62
      %s80 = sphi 0, %s80
      %s82 = sphi 0, %s80
      %s83 = sphi 0, %s82
      %s97 = sphi 0, %s83
      %s101 = sphi 0, %s101
      %s103 = sphi 0, %s101
      %s104 = sphi 0, %s103
      %s118 = sphi 0, %s104
      %s122 = sphi 0, %s122
      %s124 = sphi 0, %s122
      %s125 = sphi 0, %s124
      %s139 = sphi 0, %s125
      %s143 = sphi 0, %s143
      %s145 = sphi 0, %s143
      %s146 = sphi 0, %s145
      %s160 = sphi 0, %s146
      %s164 = sphi 0, %s164
      %s166 = sphi 0, %s164
      %s167 = sphi 0, %s166
      %s181 = sphi 0, %s167
      %s185 = sphi 0, %s185
      %s187 = sphi 0, %s185
      %s188 = sphi 0, %s187
      %s202 = sphi 0, %s188
      %s206 = sphi 0, %s206
      %s208 = sphi 0, %s206
      %s209 = sphi 0, %s208
      %s223 = sphi 0, %s209
      %s227 = sphi 0, %s227
      %s229 = sphi 0, %s227
      %s230 = sphi 0, %s229
      %s244 = sphi 0, %s230
      %s248 = sphi 0, %s248
      %s250 = sphi 0, %s248
      %s251 = sphi 0, %s250
      %s265 = sphi 0, %s251
      %s269 = sphi 0, %s269
      %s271 = sphi 0, %s269
      %s272 = sphi 0, %s271
      %s286 = sphi 0, %s272
      %s290 = sphi 0, %s290
      %s292 = sphi 0, %s290
      %s293 = sphi 0, %s292
      %s307 = sphi 0, %s293
      %s313 = sphi 0, %s315
      %s316 = sphi 0, %s313
      %s317 = sphi 0, %s316
      %s333 = sphi 0, %s317
    $region4: #{tpu_custom_call.1} parent=1 // loop_header_branch
      %28 = sbr.rel (%p26) target = $region8
    $region5: #{tpu_custom_call.1} parent=1 // loop_body
      %s30 = ssub.s32 %s25, 1
      %s31 = ssub.s32 %s25, 2
      %s32 = sadd.s32 %s25, 1
      %s33 = ssub.s32 %s25, %s32
      %p34 = scmp.eq.s32.totalorder %s33, 0
      %s36 = sadd.s32 %s35, 1
      %s37 = scalar_select %p34, %s35, %s36
      %p40 = pneg %p34
      %p41 = scmp.eq.s32.totalorder %s25, 1
      %p42 = por %p40, %p41
      %p43 = scmp.ne.s32.totalorder %s35, %s38
      %p44 = scmp.eq.s32.totalorder %s25, 0
      %p45 = por %p43, %p44
      %p46 = scmp.ne.s32.totalorder %s35, %s38
      %p47 = scmp.eq.s32.totalorder %s30, 1
      %p48 = por %p46, %p47
      %p49 = scmp.ne.s32.totalorder %s38, %s39
      %p50 = scmp.eq.s32.totalorder %s30, 0
      %p51 = por %p49, %p50
      %p52 = scmp.ne.s32.totalorder %s38, %s39
      %p53 = scmp.eq.s32.totalorder %s31, 1
      %p54 = por %p52, %p53
      %p56 = scmp.ne.s32.totalorder %s39, %s55
      %p57 = scmp.eq.s32.totalorder %s31, 0
      %p58 = por %p56, %p57
      %s60 = sadd.s32 %s59, 1
      %p63 = scmp.eq.s32.totalorder %s25, 1
      %p64 = scmp.ne.s32.totalorder %s59, %s61
      %p65 = scmp.eq.s32.totalorder %s25, 0
      %p66 = por %p64, %p65
      %p67 = scmp.ne.s32.totalorder %s59, %s61
      %p68 = scmp.eq.s32.totalorder %s30, 1
      %p69 = por %p67, %p68
      %p70 = scmp.ne.s32.totalorder %s61, %s62
      %p71 = scmp.eq.s32.totalorder %s30, 0
      %p72 = por %p70, %p71
      %p73 = scmp.ne.s32.totalorder %s61, %s62
      %p74 = scmp.eq.s32.totalorder %s31, 1
      %p75 = por %p73, %p74
      %p77 = scmp.ne.s32.totalorder %s62, %s76
      %p78 = scmp.eq.s32.totalorder %s31, 0
      %p79 = por %p77, %p78
      %s81 = sadd.s32 %s80, 1
      %p84 = scmp.eq.s32.totalorder %s25, 1
      %p85 = scmp.ne.s32.totalorder %s80, %s82
      %p86 = scmp.eq.s32.totalorder %s25, 0
      %p87 = por %p85, %p86
      %p88 = scmp.ne.s32.totalorder %s80, %s82
      %p89 = scmp.eq.s32.totalorder %s30, 1
      %p90 = por %p88, %p89
      %p91 = scmp.ne.s32.totalorder %s82, %s83
      %p92 = scmp.eq.s32.totalorder %s30, 0
      %p93 = por %p91, %p92
      %p94 = scmp.ne.s32.totalorder %s82, %s83
      %p95 = scmp.eq.s32.totalorder %s31, 1
      %p96 = por %p94, %p95
      %p98 = scmp.ne.s32.totalorder %s83, %s97
      %p99 = scmp.eq.s32.totalorder %s31, 0
      %p100 = por %p98, %p99
      %s102 = sadd.s32 %s101, 1
      %p105 = scmp.eq.s32.totalorder %s25, 1
      %p106 = scmp.ne.s32.totalorder %s101, %s103
      %p107 = scmp.eq.s32.totalorder %s25, 0
      %p108 = por %p106, %p107
      %p109 = scmp.ne.s32.totalorder %s101, %s103
      %p110 = scmp.eq.s32.totalorder %s30, 1
      %p111 = por %p109, %p110
      %p112 = scmp.ne.s32.totalorder %s103, %s104
      %p113 = scmp.eq.s32.totalorder %s30, 0
      %p114 = por %p112, %p113
      %p115 = scmp.ne.s32.totalorder %s103, %s104
      %p116 = scmp.eq.s32.totalorder %s31, 1
      %p117 = por %p115, %p116
      %p119 = scmp.ne.s32.totalorder %s104, %s118
      %p120 = scmp.eq.s32.totalorder %s31, 0
      %p121 = por %p119, %p120
      %s123 = sadd.s32 %s122, 1
      %p126 = scmp.eq.s32.totalorder %s25, 1
      %p127 = scmp.ne.s32.totalorder %s122, %s124
      %p128 = scmp.eq.s32.totalorder %s25, 0
      %p129 = por %p127, %p128
      %p130 = scmp.ne.s32.totalorder %s122, %s124
      %p131 = scmp.eq.s32.totalorder %s30, 1
      %p132 = por %p130, %p131
      %p133 = scmp.ne.s32.totalorder %s124, %s125
      %p134 = scmp.eq.s32.totalorder %s30, 0
      %p135 = por %p133, %p134
      %p136 = scmp.ne.s32.totalorder %s124, %s125
      %p137 = scmp.eq.s32.totalorder %s31, 1
      %p138 = por %p136, %p137
      %p140 = scmp.ne.s32.totalorder %s125, %s139
      %p141 = scmp.eq.s32.totalorder %s31, 0
      %p142 = por %p140, %p141
      %s144 = sadd.s32 %s143, 1
      %p147 = scmp.eq.s32.totalorder %s25, 1
      %p148 = scmp.ne.s32.totalorder %s143, %s145
      %p149 = scmp.eq.s32.totalorder %s25, 0
      %p150 = por %p148, %p149
      %p151 = scmp.ne.s32.totalorder %s143, %s145
      %p152 = scmp.eq.s32.totalorder %s30, 1
      %p153 = por %p151, %p152
      %p154 = scmp.ne.s32.totalorder %s145, %s146
      %p155 = scmp.eq.s32.totalorder %s30, 0
      %p156 = por %p154, %p155
      %p157 = scmp.ne.s32.totalorder %s145, %s146
      %p158 = scmp.eq.s32.totalorder %s31, 1
      %p159 = por %p157, %p158
      %p161 = scmp.ne.s32.totalorder %s146, %s160
      %p162 = scmp.eq.s32.totalorder %s31, 0
      %p163 = por %p161, %p162
      %s165 = sadd.s32 %s164, 1
      %p168 = scmp.eq.s32.totalorder %s25, 1
      %p169 = scmp.ne.s32.totalorder %s164, %s166
      %p170 = scmp.eq.s32.totalorder %s25, 0
      %p171 = por %p169, %p170
      %p172 = scmp.ne.s32.totalorder %s164, %s166
      %p173 = scmp.eq.s32.totalorder %s30, 1
      %p174 = por %p172, %p173
      %p175 = scmp.ne.s32.totalorder %s166, %s167
      %p176 = scmp.eq.s32.totalorder %s30, 0
      %p177 = por %p175, %p176
      %p178 = scmp.ne.s32.totalorder %s166, %s167
      %p179 = scmp.eq.s32.totalorder %s31, 1
      %p180 = por %p178, %p179
      %p182 = scmp.ne.s32.totalorder %s167, %s181
      %p183 = scmp.eq.s32.totalorder %s31, 0
      %p184 = por %p182, %p183
      %s186 = sadd.s32 %s185, 1
      %p189 = scmp.eq.s32.totalorder %s25, 1
      %p190 = scmp.ne.s32.totalorder %s185, %s187
      %p191 = scmp.eq.s32.totalorder %s25, 0
      %p192 = por %p190, %p191
      %p193 = scmp.ne.s32.totalorder %s185, %s187
      %p194 = scmp.eq.s32.totalorder %s30, 1
      %p195 = por %p193, %p194
      %p196 = scmp.ne.s32.totalorder %s187, %s188
      %p197 = scmp.eq.s32.totalorder %s30, 0
      %p198 = por %p196, %p197
      %p199 = scmp.ne.s32.totalorder %s187, %s188
      %p200 = scmp.eq.s32.totalorder %s31, 1
      %p201 = por %p199, %p200
      %p203 = scmp.ne.s32.totalorder %s188, %s202
      %p204 = scmp.eq.s32.totalorder %s31, 0
      %p205 = por %p203, %p204
      %s207 = sadd.s32 %s206, 1
      %p210 = scmp.eq.s32.totalorder %s25, 1
      %p211 = scmp.ne.s32.totalorder %s206, %s208
      %p212 = scmp.eq.s32.totalorder %s25, 0
      %p213 = por %p211, %p212
      %p214 = scmp.ne.s32.totalorder %s206, %s208
      %p215 = scmp.eq.s32.totalorder %s30, 1
      %p216 = por %p214, %p215
      %p217 = scmp.ne.s32.totalorder %s208, %s209
      %p218 = scmp.eq.s32.totalorder %s30, 0
      %p219 = por %p217, %p218
      %p220 = scmp.ne.s32.totalorder %s208, %s209
      %p221 = scmp.eq.s32.totalorder %s31, 1
      %p222 = por %p220, %p221
      %p224 = scmp.ne.s32.totalorder %s209, %s223
      %p225 = scmp.eq.s32.totalorder %s31, 0
      %p226 = por %p224, %p225
      %s228 = sadd.s32 %s227, 1
      %p231 = scmp.eq.s32.totalorder %s25, 1
      %p232 = scmp.ne.s32.totalorder %s227, %s229
      %p233 = scmp.eq.s32.totalorder %s25, 0
      %p234 = por %p232, %p233
      %p235 = scmp.ne.s32.totalorder %s227, %s229
      %p236 = scmp.eq.s32.totalorder %s30, 1
      %p237 = por %p235, %p236
      %p238 = scmp.ne.s32.totalorder %s229, %s230
      %p239 = scmp.eq.s32.totalorder %s30, 0
      %p240 = por %p238, %p239
      %p241 = scmp.ne.s32.totalorder %s229, %s230
      %p242 = scmp.eq.s32.totalorder %s31, 1
      %p243 = por %p241, %p242
      %p245 = scmp.ne.s32.totalorder %s230, %s244
      %p246 = scmp.eq.s32.totalorder %s31, 0
      %p247 = por %p245, %p246
      %s249 = sadd.s32 %s248, 1
      %p252 = scmp.eq.s32.totalorder %s25, 1
      %p253 = scmp.ne.s32.totalorder %s248, %s250
      %p254 = scmp.eq.s32.totalorder %s25, 0
      %p255 = por %p253, %p254
      %p256 = scmp.ne.s32.totalorder %s248, %s250
      %p257 = scmp.eq.s32.totalorder %s30, 1
      %p258 = por %p256, %p257
      %p259 = scmp.ne.s32.totalorder %s250, %s251
      %p260 = scmp.eq.s32.totalorder %s30, 0
      %p261 = por %p259, %p260
      %p262 = scmp.ne.s32.totalorder %s250, %s251
      %p263 = scmp.eq.s32.totalorder %s31, 1
      %p264 = por %p262, %p263
      %p266 = scmp.ne.s32.totalorder %s251, %s265
      %p267 = scmp.eq.s32.totalorder %s31, 0
      %p268 = por %p266, %p267
      %s270 = sadd.s32 %s269, 1
      %p273 = scmp.eq.s32.totalorder %s25, 1
      %p274 = scmp.ne.s32.totalorder %s269, %s271
      %p275 = scmp.eq.s32.totalorder %s25, 0
      %p276 = por %p274, %p275
      %p277 = scmp.ne.s32.totalorder %s269, %s271
      %p278 = scmp.eq.s32.totalorder %s30, 1
      %p279 = por %p277, %p278
      %p280 = scmp.ne.s32.totalorder %s271, %s272
      %p281 = scmp.eq.s32.totalorder %s30, 0
      %p282 = por %p280, %p281
      %p283 = scmp.ne.s32.totalorder %s271, %s272
      %p284 = scmp.eq.s32.totalorder %s31, 1
      %p285 = por %p283, %p284
      %p287 = scmp.ne.s32.totalorder %s272, %s286
      %p288 = scmp.eq.s32.totalorder %s31, 0
      %p289 = por %p287, %p288
      %s291 = sadd.s32 %s290, 1
      %p294 = scmp.eq.s32.totalorder %s25, 1
      %p295 = scmp.ne.s32.totalorder %s290, %s292
      %p296 = scmp.eq.s32.totalorder %s25, 0
      %p297 = por %p295, %p296
      %p298 = scmp.ne.s32.totalorder %s290, %s292
      %p299 = scmp.eq.s32.totalorder %s30, 1
      %p300 = por %p298, %p299
      %p301 = scmp.ne.s32.totalorder %s292, %s293
      %p302 = scmp.eq.s32.totalorder %s30, 0
      %p303 = por %p301, %p302
      %p304 = scmp.ne.s32.totalorder %s292, %s293
      %p305 = scmp.eq.s32.totalorder %s31, 1
      %p306 = por %p304, %p305
      %p308 = scmp.ne.s32.totalorder %s293, %s307
      %p309 = scmp.eq.s32.totalorder %s31, 0
      %p310 = por %p308, %p309
      %s311 = ssub.s32 %s25, %s32
      %p312 = scmp.eq.s32.totalorder %s311, 0
      %s314 = sadd.s32 %s313, 1
      %s315 = scalar_select %p312, %s313, %s314
      %p318 = pneg %p312
      %p319 = scmp.eq.s32.totalorder %s25, 1
      %p320 = por %p318, %p319
      %p321 = scmp.ne.s32.totalorder %s313, %s316
      %p322 = scmp.eq.s32.totalorder %s25, 0
      %p323 = por %p321, %p322
      %p324 = scmp.ne.s32.totalorder %s313, %s316
      %p325 = scmp.eq.s32.totalorder %s30, 1
      %p326 = por %p324, %p325
      %p327 = scmp.ne.s32.totalorder %s316, %s317
      %p328 = scmp.eq.s32.totalorder %s30, 0
      %p329 = por %p327, %p328
      %p330 = scmp.ne.s32.totalorder %s316, %s317
      %p331 = scmp.eq.s32.totalorder %s31, 1
      %p332 = por %p330, %p331
      %p334 = scmp.ne.s32.totalorder %s317, %s333
      %p335 = scmp.eq.s32.totalorder %s31, 0
      %p336 = por %p334, %p335
      %p337 = scmp.le.s32.totalorder 1, %s25
      %p338 = scmp.lt.s32.totalorder %s25, 3
      %p339 = pnand %p337, %p338
      %p340 = pneg %p339
      // Predicated region
      $region9: #{tpu_custom_call.1} parent=5 // pred_check
        _
      $region10: #{tpu_custom_call.1} parent=5 // pred_check_branch
        %342 = sbr.rel (%p339) target = $region12
      $region11: #{tpu_custom_call.1} parent=5 // pred_region
        %s343 = ssub.s32 %s25, 1
        // Predicated region
        $region13: #{tpu_custom_call.1} parent=11 // pred_check
          %p344 = pneg %p72
        $region14: #{tpu_custom_call.1} parent=11 // pred_check_branch
          %346 = sbr.rel (%p344) target = $region16
        $region15: #{tpu_custom_call.1} parent=11 // pred_region
          _
        $region16: #{tpu_custom_call.1} parent=11 // pred_fallthru
          _
        // Predicated region
        $region17: #{tpu_custom_call.1} parent=11 // pred_check
          %p347 = pneg %p93
        $region18: #{tpu_custom_call.1} parent=11 // pred_check_branch
          %349 = sbr.rel (%p347) target = $region20
        $region19: #{tpu_custom_call.1} parent=11 // pred_region
          _
        $region20: #{tpu_custom_call.1} parent=11 // pred_fallthru
          _
        // Predicated region
        $region21: #{tpu_custom_call.1} parent=11 // pred_check
          %p350 = pneg %p114
        $region22: #{tpu_custom_call.1} parent=11 // pred_check_branch
          %352 = sbr.rel (%p350) target = $region24
        $region23: #{tpu_custom_call.1} parent=11 // pred_region
          _
        $region24: #{tpu_custom_call.1} parent=11 // pred_fallthru
          _
        // Predicated region
        $region25: #{tpu_custom_call.1} parent=11 // pred_check
          %p353 = pneg %p135
        $region26: #{tpu_custom_call.1} parent=11 // pred_check_branch
          %355 = sbr.rel (%p353) target = $region28
        $region27: #{tpu_custom_call.1} parent=11 // pred_region
          _
        $region28: #{tpu_custom_call.1} parent=11 // pred_fallthru
          _
        // Predicated region
        $region29: #{tpu_custom_call.1} parent=11 // pred_check
          %p356 = pneg %p156
        $region30: #{tpu_custom_call.1} parent=11 // pred_check_branch
          %358 = sbr.rel (%p356) target = $region32
        $region31: #{tpu_custom_call.1} parent=11 // pred_region
          _
        $region32: #{tpu_custom_call.1} parent=11 // pred_fallthru
          _
        // Predicated region
        $region33: #{tpu_custom_call.1} parent=11 // pred_check
          %p359 = pneg %p177
        $region34: #{tpu_custom_call.1} parent=11 // pred_check_branch
          %361 = sbr.rel (%p359) target = $region36
        $region35: #{tpu_custom_call.1} parent=11 // pred_region
          _
        $region36: #{tpu_custom_call.1} parent=11 // pred_fallthru
          _
        // Predicated region
        $region37: #{tpu_custom_call.1} parent=11 // pred_check
          %p362 = pneg %p198
        $region38: #{tpu_custom_call.1} parent=11 // pred_check_branch
          %364 = sbr.rel (%p362) target = $region40
        $region39: #{tpu_custom_call.1} parent=11 // pred_region
          %s366 = ssub.s32 16, 16
          %367 = vsyncadd [#allocation3], %s366
          %s369 = sshll.u32 [#allocation2], 4
          %s370 = int_to_ptr.vmem [resolvable:$true] %s369
          %372 = dma.hbm_to_vmem [thread:$0]  %s7, 16, %s370, [#allocation3]
        $region40: #{tpu_custom_call.1} parent=11 // pred_fallthru
          _
        // Predicated region
        $region41: #{tpu_custom_call.1} parent=11 // pred_check
          %p373 = pneg %p219
        $region42: #{tpu_custom_call.1} parent=11 // pred_check_branch
          %375 = sbr.rel (%p373) target = $region44
        $region43: #{tpu_custom_call.1} parent=11 // pred_region
          %s377 = ssub.s32 16, 16
          %378 = vsyncadd [#allocation6], %s377
          %s380 = sshll.u32 [#allocation5], 4
          %s381 = int_to_ptr.vmem [resolvable:$true] %s380
          %383 = dma.hbm_to_vmem [thread:$0]  %s8, 16, %s381, [#allocation6]
        $region44: #{tpu_custom_call.1} parent=11 // pred_fallthru
          _
        // Predicated region
        $region45: #{tpu_custom_call.1} parent=11 // pred_check
          %p384 = pneg %p240
        $region46: #{tpu_custom_call.1} parent=11 // pred_check_branch
          %386 = sbr.rel (%p384) target = $region48
        $region47: #{tpu_custom_call.1} parent=11 // pred_region
          %s388 = ssub.s32 256, 256
          %389 = vsyncadd [#allocation6], %s388
          %s390 = sshll.u32 [#allocation7], 4
          %s391 = int_to_ptr.vmem [resolvable:$true] %s390
          %396 = dma.hbm_to_vmem [thread:$0]  %s9, 256, %s391, [#allocation6], 64, 64, 4
        $region48: #{tpu_custom_call.1} parent=11 // pred_fallthru
          _
        // Predicated region
        $region49: #{tpu_custom_call.1} parent=11 // pred_check
          %p397 = pneg %p261
        $region50: #{tpu_custom_call.1} parent=11 // pred_check_branch
          %399 = sbr.rel (%p397) target = $region52
        $region51: #{tpu_custom_call.1} parent=11 // pred_region
          %s401 = ssub.s32 16, 16
          %402 = vsyncadd [#allocation9], %s401
          %s404 = sshll.u32 [#allocation8], 4
          %s405 = int_to_ptr.vmem [resolvable:$true] %s404
          %407 = dma.hbm_to_vmem [thread:$0]  %s10, 16, %s405, [#allocation9]
        $region52: #{tpu_custom_call.1} parent=11 // pred_fallthru
          _
        // Predicated region
        $region53: #{tpu_custom_call.1} parent=11 // pred_check
          %p408 = pneg %p282
        $region54: #{tpu_custom_call.1} parent=11 // pred_check_branch
          %410 = sbr.rel (%p408) target = $region56
        $region55: #{tpu_custom_call.1} parent=11 // pred_region
          _
        $region56: #{tpu_custom_call.1} parent=11 // pred_fallthru
          _
        // Predicated region
        $region57: #{tpu_custom_call.1} parent=11 // pred_check
          %p411 = pneg %p303
        $region58: #{tpu_custom_call.1} parent=11 // pred_check_branch
          %413 = sbr.rel (%p411) target = $region60
        $region59: #{tpu_custom_call.1} parent=11 // pred_region
          _
        $region60: #{tpu_custom_call.1} parent=11 // pred_fallthru
          _
      $region12: #{tpu_custom_call.1} parent=5 // pred_fallthru
        _
      %p414 = scmp.lt.s32.totalorder %s25, 2
      // Predicated region
      $region61: #{tpu_custom_call.1} parent=5 // pred_check
        %p415 = pneg %p414
      $region62: #{tpu_custom_call.1} parent=5 // pred_check_branch
        %417 = sbr.rel (%p415) target = $region64
      $region63: #{tpu_custom_call.1} parent=5 // pred_region
        // Predicated region
        $region65: #{tpu_custom_call.1} parent=63 // pred_check
          %p418 = pneg %p45
        $region66: #{tpu_custom_call.1} parent=63 // pred_check_branch
          %420 = sbr.rel (%p418) target = $region68
        $region67: #{tpu_custom_call.1} parent=63 // pred_region
          %p421 = scmp.lt.s32.totalorder %s25, 1
          %s422 = scalar_select %p421, %s25, 1
          %s423 = smul.addr %s422, 8
          %s424 = scalar_lea.vmem %s0, %s423
        $region68: #{tpu_custom_call.1} parent=63 // pred_fallthru
          _
      $region64: #{tpu_custom_call.1} parent=5 // pred_fallthru
        _
      %p425 = scmp.le.s32.totalorder 1, %s25
      %p426 = scmp.lt.s32.totalorder %s25, 3
      %p427 = pnand %p425, %p426
      %p428 = pneg %p427
      // Predicated region
      $region69: #{tpu_custom_call.1} parent=5 // pred_check
        _
      $region70: #{tpu_custom_call.1} parent=5 // pred_check_branch
        %430 = sbr.rel (%p427) target = $region72
      $region71: #{tpu_custom_call.1} parent=5 // pred_region
        %s431 = ssub.s32 %s25, 1
        // Predicated region
        $region73: #{tpu_custom_call.1} parent=71 // pred_check
          %p432 = pneg %p198
        $region74: #{tpu_custom_call.1} parent=71 // pred_check_branch
          %434 = sbr.rel (%p432) target = $region76
        $region75: #{tpu_custom_call.1} parent=71 // pred_region
          %435 = dma.done [#allocation3], 16
        $region76: #{tpu_custom_call.1} parent=71 // pred_fallthru
          _
        // Predicated region
        $region77: #{tpu_custom_call.1} parent=71 // pred_check
          %p436 = pneg %p219
        $region78: #{tpu_custom_call.1} parent=71 // pred_check_branch
          %438 = sbr.rel (%p436) target = $region80
        $region79: #{tpu_custom_call.1} parent=71 // pred_region
          %439 = dma.done [#allocation6], 16
        $region80: #{tpu_custom_call.1} parent=71 // pred_fallthru
          _
        // Predicated region
        $region81: #{tpu_custom_call.1} parent=71 // pred_check
          %p440 = pneg %p240
        $region82: #{tpu_custom_call.1} parent=71 // pred_check_branch
          %442 = sbr.rel (%p440) target = $region84
        $region83: #{tpu_custom_call.1} parent=71 // pred_region
          %443 = dma.done [#allocation6], 256
        $region84: #{tpu_custom_call.1} parent=71 // pred_fallthru
          _
        // Predicated region
        $region85: #{tpu_custom_call.1} parent=71 // pred_check
          %p444 = pneg %p261
        $region86: #{tpu_custom_call.1} parent=71 // pred_check_branch
          %446 = sbr.rel (%p444) target = $region88
        $region87: #{tpu_custom_call.1} parent=71 // pred_region
          %447 = dma.done [#allocation9], 16
        $region88: #{tpu_custom_call.1} parent=71 // pred_fallthru
          _
        %p448 = scmp.lt.s32.totalorder %s30, 1
        %s449 = scalar_select %p448, %s30, 1
        %s450 = smul.addr %s449, 8
        %s451 = scalar_lea.vmem %s0, %s450
        %p452 = pneg %p51
        %p453 = pneg %p48
        %p454 = pneg %p72
        %p455 = pneg %p69
        %p456 = pneg %p93
        %p457 = pneg %p90
        %p458 = pneg %p114
        %p459 = pneg %p111
        %p460 = pneg %p135
        %p461 = pneg %p132
        %p462 = pneg %p156
        %p463 = pneg %p153
        %p464 = pneg %p177
        %p465 = pneg %p174
        %p466 = pneg %p198
        %p467 = pneg %p195
        %p468 = pneg %p219
        %p469 = pneg %p216
        %p470 = pneg %p240
        %p471 = pneg %p237
        %p472 = pneg %p261
        %p473 = pneg %p258
        %p474 = pneg %p282
        %p475 = pneg %p279
        %p476 = pneg %p303
        %p477 = pneg %p300
        %p478 = pneg %p329
        %p479 = pneg %p326
        %s480 = sand.u32 %s316, 1
        %s481 = scalar_lea.sflag [#allocation4], %s480
        %s482 = sand.u32 %s316, 1
        %s483 = smul.addr %s482, 8
        %s484 = scalar_lea.vmem [#allocation10], %s483
        %p485 = scmp.lt.s32.totalorder %s30, 1
        %s486 = scalar_select %p485, %s30, 1
        %s487 = smul.addr %s486, 8
        %s488 = scalar_lea.vmem %s0, %s487
        %v490 = vld [vmem:[%s488] sm:$0xff]
        %v491 = vld [vmem:[%s1] sm:$0x1]
        %v492 = vld [vmem:[%s2] sm:$0x1]
        %vm493 = vcmask 261120
        %v494 = vsel %vm493, %v490, 0.0
        %495 = vadd.xlane.f32.xlu0 %v494
        %v496 = vpop.xlane.xlu0 %495
        %v497 = vrcp.pop 32.0
        %v498 = vmul.f32 %v496, %v497
        %v499 = vsub.f32 %v490, %v498
        %v500 = vmul.f32 %v499, %v499
        %v501 = vsel %vm493, %v500, 0.0
        %502 = vadd.xlane.f32.xlu0 %v501
        %v503 = vpop.xlane.xlu0 %502
        %v504 = vmul.f32 %v503, %v497
        %v505 = vadd.f32 %v504, 1e-05
        %v506 = vrsqrt.pop %v505
        %v507 = vmul.f32 %v499, %v506
        %v509 = vlaneseq
        %v510 = vshrl.u32 %v509, 7
        %v511 = vsub.s32 0, %v510
        %v512 = vrot.slane %v491, %v511
        %v514 = vmul.f32 %v507, %v512
        %v516 = vlaneseq
        %v517 = vshrl.u32 %v516, 7
        %v518 = vsub.s32 0, %v517
        %v519 = vrot.slane %v492, %v518
        %v521 = vadd.f32 %v514, %v519
        %v522 = vpack.c.bf16 %v521, %v521
        %v523 = vld [vmem:[%s3] sm:$0xf]
        %v524 = vld [vmem:[%s3 + $0x4] sm:$0xf]
        %v525 = vld [vmem:[%s3 + $0x8] sm:$0xf]
        %v526 = vld [vmem:[%s3 + $0xc] sm:$0xf]
        %v527 = vld [vmem:[%s4] sm:$0x1]
        %v529 = vlaneseq
        %v530 = vshrl.u32 %v529, 7
        %v531 = vsub.s32 0, %v530
        %v532 = vrot.slane %v527, %v531
        %v538 = vunpack.c.l.b16 %v523
        %v539 = vunpack.c.l.b16 %v524
        %v540 = vunpack.c.l.b16 %v525
        %v541 = vunpack.c.l.b16 %v526
        %v542 = vpack.c.b16 %v539, %v538
        %v543 = vpack.c.b16 %v541, %v540
        %v547 = vsel %vm493, %v522, 0
        %549 = vmatprep.subr.bf16.mxu0 0
        %550 = vmatpush1.bf16.msra.mxu0 0
        %551 = vmatprep.subr.bf16.mxu0 0
        %552 = vmatpush1.bf16.msra.mxu0 0
        %553 = vmatprep.subr.bf16.mxu0 0
        %554 = vmatpush1.bf16.msra.mxu0 0
        %555 = vmatprep.subr.bf16.mxu0 0
        %556 = vmatpush1.bf16.msra.mxu0 0
        %557 = vmatprep.subr.bf16.mxu0 0
        %558 = vmatpush1.bf16.msra.mxu0 0
        %559 = vmatprep.subr.bf16.mxu0 0
        %560 = vmatpush1.bf16.msra.mxu0 0
        %561 = vmatprep.subr.bf16.mxu0 0
        %562 = vmatpush1.bf16.msra.mxu0 %v543
        %563 = vmatprep.subr.bf16.mxu0 0
        %564 = vmatpush1.bf16.msra.mxu0 %v542
        %565 = vmatprep.subr.bf16.mxu0 0
        %566 = vmatpush2.bf16.msra.mxu0 0
        %567 = vmatprep.subr.bf16.mxu0 0
        %568 = vmatpush2.bf16.msra.mxu0 0
        %569 = vmatprep.subr.bf16.mxu0 0
        %570 = vmatpush2.bf16.msra.mxu0 0
        %571 = vmatprep.subr.bf16.mxu0 0
        %572 = vmatpush2.bf16.msra.mxu0 0
        %573 = vmatprep.subr.bf16.mxu0 0
        %574 = vmatpush2.bf16.msra.mxu0 0
        %575 = vmatprep.subr.bf16.mxu0 0
        %576 = vmatpush2.bf16.msra.mxu0 0
        %577 = vmatprep.subr.bf16.mxu0 0
        %578 = vmatpush2.bf16.msra.mxu0 0
        %579 = vmatprep.subr.bf16.mxu0 0
        %580 = vmatpush2.bf16.msra.mxu0 0
        %581 = vmatprep.mubr.bf16.mxu0 0
        %582 = vmatmul.mubr.bf16.gmra.mxu0 %v547
        %v583 = vpop.f32.mrf.mxu0
        %v584 = vadd.f32 %v532, %v583
        %v585 = vpop.f32.mrf.mxu0
        %v586 = vpop.f32.mrf.mxu0
        %v587 = vpop.f32.mrf.mxu0
        %588 = vdwg.mxu0
        %590 = vrot.lane.b32.xlu0 %v584, 120
        %v591 = vpop.permute.xlu0 %590
        %592 = vrot.lane.b32.xlu0 %v584, 112
        %v593 = vpop.permute.xlu0 %592
        %594 = vrot.lane.b32.xlu0 %v584, 104
        %v595 = vpop.permute.xlu0 %594
        %596 = vrot.lane.b32.xlu0 %v584, 96
        %v597 = vpop.permute.xlu0 %596
        %vm598 = vcmask 64512
        %v599 = vsel %vm598, %v584, 0
        %v601 = vsel %vm598, %v597, 0
        %603 = vmatprep.subr.mxu0 0.0
        %604 = vmatpush1.xpose.msra.mxu0 0.0
        %605 = vmatprep.subr.mxu0 0.0
        %606 = vmatpush1.xpose.msra.mxu0 0.0
        %607 = vmatprep.subr.mxu0 0.0
        %608 = vmatpush1.xpose.msra.mxu0 0.0
        %609 = vmatprep.subr.mxu0 0.0
        %610 = vmatpush1.xpose.msra.mxu0 0.0
        %611 = vmatprep.subr.mxu0 0.0
        %612 = vmatpush1.xpose.msra.mxu0 0.0
        %613 = vmatprep.subr.mxu0 0.0
        %614 = vmatpush1.xpose.msra.mxu0 0.0
        %615 = vmatprep.subr.mxu0 0.0
        %616 = vmatpush1.xpose.msra.mxu0 0.0
        %617 = vmatprep.subr.mxu0 0.0
        %618 = vmatpush1.xpose.msra.mxu0 0.0
        %619 = vmatprep.subr.mxu0 0.0
        %620 = vmatpush1.xpose.msra.mxu0 0.0
        %621 = vmatprep.subr.mxu0 0.0
        %622 = vmatpush1.xpose.msra.mxu0 0.0
        %623 = vmatprep.subr.mxu0 0.0
        %624 = vmatpush1.xpose.msra.mxu0 0.0
        %625 = vmatprep.subr.mxu0 0.0
        %626 = vmatpush1.xpose.msra.mxu0 0.0
        %627 = vmatprep.subr.mxu0 0.0
        %628 = vmatpush1.xpose.msra.mxu0 0.0
        %629 = vmatprep.subr.mxu0 0.0
        %630 = vmatpush1.xpose.msra.mxu0 0.0
        %631 = vmatprep.subr.mxu0 0.0
        %632 = vmatpush1.xpose.msra.mxu0 0.0
        %633 = vmatprep.subr.mxu0 0.0
        %634 = vmatpush1.xpose.msra.mxu0 %v601
        %635 = vmatprep.subr.mxu0 0.0
        %636 = vmatpush2.xpose.msra.mxu0 0.0
        %637 = vmatprep.subr.mxu0 0.0
        %638 = vmatpush2.xpose.msra.mxu0 0.0
        %639 = vmatprep.subr.mxu0 0.0
        %640 = vmatpush2.xpose.msra.mxu0 0.0
        %641 = vmatprep.subr.mxu0 0.0
        %642 = vmatpush2.xpose.msra.mxu0 0.0
        %643 = vmatprep.subr.mxu0 0.0
        %644 = vmatpush2.xpose.msra.mxu0 0.0
        %645 = vmatprep.subr.mxu0 0.0
        %646 = vmatpush2.xpose.msra.mxu0 0.0
        %647 = vmatprep.subr.mxu0 0.0
        %648 = vmatpush2.xpose.msra.mxu0 0.0
        %649 = vmatprep.subr.mxu0 0.0
        %650 = vmatpush2.xpose.msra.mxu0 0.0
        %651 = vmatprep.subr.mxu0 0.0
        %652 = vmatpush2.xpose.msra.mxu0 0.0
        %653 = vmatprep.subr.mxu0 0.0
        %654 = vmatpush2.xpose.msra.mxu0 0.0
        %655 = vmatprep.subr.mxu0 0.0
        %656 = vmatpush2.xpose.msra.mxu0 0.0
        %657 = vmatprep.subr.mxu0 0.0
        %658 = vmatpush2.xpose.msra.mxu0 0.0
        %659 = vmatprep.subr.mxu0 0.0
        %660 = vmatpush2.xpose.msra.mxu0 0.0
        %661 = vmatprep.subr.mxu0 0.0
        %662 = vmatpush2.xpose.msra.mxu0 0.0
        %663 = vmatprep.subr.mxu0 0.0
        %664 = vmatpush2.xpose.msra.mxu0 0.0
        %665 = vmatprep.subr.mxu0 0.0
        %666 = vmatpush2.xpose.msra.mxu0 0.0
        %667 = vmatprep.mubr.f32.mxu0 0.0
        %668 = vmatmul.mubr.f32.gmra.mxu0 %v599
        %v669 = vpop.f32.mrf.mxu0
        %v670 = vadd.f32 0.0, %v669
        %v671 = vpop.f32.mrf.mxu0
        %672 = vdwg.mxu0
        %673 = vrot.lane.b32.xlu0 %v591, 96
        %v674 = vpop.permute.xlu0 %673
        %v675 = vsel %vm598, %v591, 0
        %v677 = vsel %vm598, %v674, 0
        %679 = vmatprep.subr.mxu0 0.0
        %680 = vmatpush1.xpose.msra.mxu0 0.0
        %681 = vmatprep.subr.mxu0 0.0
        %682 = vmatpush1.xpose.msra.mxu0 0.0
        %683 = vmatprep.subr.mxu0 0.0
        %684 = vmatpush1.xpose.msra.mxu0 0.0
        %685 = vmatprep.subr.mxu0 0.0
        %686 = vmatpush1.xpose.msra.mxu0 0.0
        %687 = vmatprep.subr.mxu0 0.0
        %688 = vmatpush1.xpose.msra.mxu0 0.0
        %689 = vmatprep.subr.mxu0 0.0
        %690 = vmatpush1.xpose.msra.mxu0 0.0
        %691 = vmatprep.subr.mxu0 0.0
        %692 = vmatpush1.xpose.msra.mxu0 0.0
        %693 = vmatprep.subr.mxu0 0.0
        %694 = vmatpush1.xpose.msra.mxu0 0.0
        %695 = vmatprep.subr.mxu0 0.0
        %696 = vmatpush1.xpose.msra.mxu0 0.0
        %697 = vmatprep.subr.mxu0 0.0
        %698 = vmatpush1.xpose.msra.mxu0 0.0
        %699 = vmatprep.subr.mxu0 0.0
        %700 = vmatpush1.xpose.msra.mxu0 0.0
        %701 = vmatprep.subr.mxu0 0.0
        %702 = vmatpush1.xpose.msra.mxu0 0.0
        %703 = vmatprep.subr.mxu0 0.0
        %704 = vmatpush1.xpose.msra.mxu0 0.0
        %705 = vmatprep.subr.mxu0 0.0
        %706 = vmatpush1.xpose.msra.mxu0 0.0
        %707 = vmatprep.subr.mxu0 0.0
        %708 = vmatpush1.xpose.msra.mxu0 0.0
        %709 = vmatprep.subr.mxu0 0.0
        %710 = vmatpush1.xpose.msra.mxu0 %v677
        %711 = vmatprep.subr.mxu0 0.0
        %712 = vmatpush2.xpose.msra.mxu0 0.0
        %713 = vmatprep.subr.mxu0 0.0
        %714 = vmatpush2.xpose.msra.mxu0 0.0
        %715 = vmatprep.subr.mxu0 0.0
        %716 = vmatpush2.xpose.msra.mxu0 0.0
        %717 = vmatprep.subr.mxu0 0.0
        %718 = vmatpush2.xpose.msra.mxu0 0.0
        %719 = vmatprep.subr.mxu0 0.0
        %720 = vmatpush2.xpose.msra.mxu0 0.0
        %721 = vmatprep.subr.mxu0 0.0
        %722 = vmatpush2.xpose.msra.mxu0 0.0
        %723 = vmatprep.subr.mxu0 0.0
        %724 = vmatpush2.xpose.msra.mxu0 0.0
        %725 = vmatprep.subr.mxu0 0.0
        %726 = vmatpush2.xpose.msra.mxu0 0.0
        %727 = vmatprep.subr.mxu0 0.0
        %728 = vmatpush2.xpose.msra.mxu0 0.0
        %729 = vmatprep.subr.mxu0 0.0
        %730 = vmatpush2.xpose.msra.mxu0 0.0
        %731 = vmatprep.subr.mxu0 0.0
        %732 = vmatpush2.xpose.msra.mxu0 0.0
        %733 = vmatprep.subr.mxu0 0.0
        %734 = vmatpush2.xpose.msra.mxu0 0.0
        %735 = vmatprep.subr.mxu0 0.0
        %736 = vmatpush2.xpose.msra.mxu0 0.0
        %737 = vmatprep.subr.mxu0 0.0
        %738 = vmatpush2.xpose.msra.mxu0 0.0
        %739 = vmatprep.subr.mxu0 0.0
        %740 = vmatpush2.xpose.msra.mxu0 0.0
        %741 = vmatprep.subr.mxu0 0.0
        %742 = vmatpush2.xpose.msra.mxu0 0.0
        %743 = vmatprep.mubr.f32.mxu0 0.0
        %744 = vmatmul.mubr.f32.gmra.mxu0 %v675
        %v745 = vpop.f32.mrf.mxu0
        %v746 = vadd.f32 0.0, %v745
        %v747 = vpop.f32.mrf.mxu0
        %748 = vdwg.mxu0
        %749 = vrot.lane.b32.xlu0 %v593, 96
        %v750 = vpop.permute.xlu0 %749
        %v751 = vsel %vm598, %v593, 0
        %v753 = vsel %vm598, %v750, 0
        %755 = vmatprep.subr.mxu0 0.0
        %756 = vmatpush1.xpose.msra.mxu0 0.0
        %757 = vmatprep.subr.mxu0 0.0
        %758 = vmatpush1.xpose.msra.mxu0 0.0
        %759 = vmatprep.subr.mxu0 0.0
        %760 = vmatpush1.xpose.msra.mxu0 0.0
        %761 = vmatprep.subr.mxu0 0.0
        %762 = vmatpush1.xpose.msra.mxu0 0.0
        %763 = vmatprep.subr.mxu0 0.0
        %764 = vmatpush1.xpose.msra.mxu0 0.0
        %765 = vmatprep.subr.mxu0 0.0
        %766 = vmatpush1.xpose.msra.mxu0 0.0
        %767 = vmatprep.subr.mxu0 0.0
        %768 = vmatpush1.xpose.msra.mxu0 0.0
        %769 = vmatprep.subr.mxu0 0.0
        %770 = vmatpush1.xpose.msra.mxu0 0.0
        %771 = vmatprep.subr.mxu0 0.0
        %772 = vmatpush1.xpose.msra.mxu0 0.0
        %773 = vmatprep.subr.mxu0 0.0
        %774 = vmatpush1.xpose.msra.mxu0 0.0
        %775 = vmatprep.subr.mxu0 0.0
        %776 = vmatpush1.xpose.msra.mxu0 0.0
        %777 = vmatprep.subr.mxu0 0.0
        %778 = vmatpush1.xpose.msra.mxu0 0.0
        %779 = vmatprep.subr.mxu0 0.0
        %780 = vmatpush1.xpose.msra.mxu0 0.0
        %781 = vmatprep.subr.mxu0 0.0
        %782 = vmatpush1.xpose.msra.mxu0 0.0
        %783 = vmatprep.subr.mxu0 0.0
        %784 = vmatpush1.xpose.msra.mxu0 0.0
        %785 = vmatprep.subr.mxu0 0.0
        %786 = vmatpush1.xpose.msra.mxu0 %v753
        %787 = vmatprep.subr.mxu0 0.0
        %788 = vmatpush2.xpose.msra.mxu0 0.0
        %789 = vmatprep.subr.mxu0 0.0
        %790 = vmatpush2.xpose.msra.mxu0 0.0
        %791 = vmatprep.subr.mxu0 0.0
        %792 = vmatpush2.xpose.msra.mxu0 0.0
        %793 = vmatprep.subr.mxu0 0.0
        %794 = vmatpush2.xpose.msra.mxu0 0.0
        %795 = vmatprep.subr.mxu0 0.0
        %796 = vmatpush2.xpose.msra.mxu0 0.0
        %797 = vmatprep.subr.mxu0 0.0
        %798 = vmatpush2.xpose.msra.mxu0 0.0
        %799 = vmatprep.subr.mxu0 0.0
        %800 = vmatpush2.xpose.msra.mxu0 0.0
        %801 = vmatprep.subr.mxu0 0.0
        %802 = vmatpush2.xpose.msra.mxu0 0.0
        %803 = vmatprep.subr.mxu0 0.0
        %804 = vmatpush2.xpose.msra.mxu0 0.0
        %805 = vmatprep.subr.mxu0 0.0
        %806 = vmatpush2.xpose.msra.mxu0 0.0
        %807 = vmatprep.subr.mxu0 0.0
        %808 = vmatpush2.xpose.msra.mxu0 0.0
        %809 = vmatprep.subr.mxu0 0.0
        %810 = vmatpush2.xpose.msra.mxu0 0.0
        %811 = vmatprep.subr.mxu0 0.0
        %812 = vmatpush2.xpose.msra.mxu0 0.0
        %813 = vmatprep.subr.mxu0 0.0
        %814 = vmatpush2.xpose.msra.mxu0 0.0
        %815 = vmatprep.subr.mxu0 0.0
        %816 = vmatpush2.xpose.msra.mxu0 0.0
        %817 = vmatprep.subr.mxu0 0.0
        %818 = vmatpush2.xpose.msra.mxu0 0.0
        %819 = vmatprep.mubr.f32.mxu0 0.0
        %820 = vmatmul.mubr.f32.gmra.mxu0 %v751
        %v821 = vpop.f32.mrf.mxu0
        %v822 = vadd.f32 0.0, %v821
        %v823 = vpop.f32.mrf.mxu0
        %824 = vdwg.mxu0
        %825 = vrot.lane.b32.xlu0 %v595, 96
        %v826 = vpop.permute.xlu0 %825
        %v827 = vsel %vm598, %v595, 0
        %v829 = vsel %vm598, %v826, 0
        %831 = vmatprep.subr.mxu0 0.0
        %832 = vmatpush1.xpose.msra.mxu0 0.0
        %833 = vmatprep.subr.mxu0 0.0
        %834 = vmatpush1.xpose.msra.mxu0 0.0
        %835 = vmatprep.subr.mxu0 0.0
        %836 = vmatpush1.xpose.msra.mxu0 0.0
        %837 = vmatprep.subr.mxu0 0.0
        %838 = vmatpush1.xpose.msra.mxu0 0.0
        %839 = vmatprep.subr.mxu0 0.0
        %840 = vmatpush1.xpose.msra.mxu0 0.0
        %841 = vmatprep.subr.mxu0 0.0
        %842 = vmatpush1.xpose.msra.mxu0 0.0
        %843 = vmatprep.subr.mxu0 0.0
        %844 = vmatpush1.xpose.msra.mxu0 0.0
        %845 = vmatprep.subr.mxu0 0.0
        %846 = vmatpush1.xpose.msra.mxu0 0.0
        %847 = vmatprep.subr.mxu0 0.0
        %848 = vmatpush1.xpose.msra.mxu0 0.0
        %849 = vmatprep.subr.mxu0 0.0
        %850 = vmatpush1.xpose.msra.mxu0 0.0
        %851 = vmatprep.subr.mxu0 0.0
        %852 = vmatpush1.xpose.msra.mxu0 0.0
        %853 = vmatprep.subr.mxu0 0.0
        %854 = vmatpush1.xpose.msra.mxu0 0.0
        %855 = vmatprep.subr.mxu0 0.0
        %856 = vmatpush1.xpose.msra.mxu0 0.0
        %857 = vmatprep.subr.mxu0 0.0
        %858 = vmatpush1.xpose.msra.mxu0 0.0
        %859 = vmatprep.subr.mxu0 0.0
        %860 = vmatpush1.xpose.msra.mxu0 0.0
        %861 = vmatprep.subr.mxu0 0.0
        %862 = vmatpush1.xpose.msra.mxu0 %v829
        %863 = vmatprep.subr.mxu0 0.0
        %864 = vmatpush2.xpose.msra.mxu0 0.0
        %865 = vmatprep.subr.mxu0 0.0
        %866 = vmatpush2.xpose.msra.mxu0 0.0
        %867 = vmatprep.subr.mxu0 0.0
        %868 = vmatpush2.xpose.msra.mxu0 0.0
        %869 = vmatprep.subr.mxu0 0.0
        %870 = vmatpush2.xpose.msra.mxu0 0.0
        %871 = vmatprep.subr.mxu0 0.0
        %872 = vmatpush2.xpose.msra.mxu0 0.0
        %873 = vmatprep.subr.mxu0 0.0
        %874 = vmatpush2.xpose.msra.mxu0 0.0
        %875 = vmatprep.subr.mxu0 0.0
        %876 = vmatpush2.xpose.msra.mxu0 0.0
        %877 = vmatprep.subr.mxu0 0.0
        %878 = vmatpush2.xpose.msra.mxu0 0.0
        %879 = vmatprep.subr.mxu0 0.0
        %880 = vmatpush2.xpose.msra.mxu0 0.0
        %881 = vmatprep.subr.mxu0 0.0
        %882 = vmatpush2.xpose.msra.mxu0 0.0
        %883 = vmatprep.subr.mxu0 0.0
        %884 = vmatpush2.xpose.msra.mxu0 0.0
        %885 = vmatprep.subr.mxu0 0.0
        %886 = vmatpush2.xpose.msra.mxu0 0.0
        %887 = vmatprep.subr.mxu0 0.0
        %888 = vmatpush2.xpose.msra.mxu0 0.0
        %889 = vmatprep.subr.mxu0 0.0
        %890 = vmatpush2.xpose.msra.mxu0 0.0
        %891 = vmatprep.subr.mxu0 0.0
        %892 = vmatpush2.xpose.msra.mxu0 0.0
        %893 = vmatprep.subr.mxu0 0.0
        %894 = vmatpush2.xpose.msra.mxu0 0.0
        %895 = vmatprep.mubr.f32.mxu0 0.0
        %896 = vmatmul.mubr.f32.gmra.mxu0 %v827
        %v897 = vpop.f32.mrf.mxu0
        %v898 = vadd.f32 0.0, %v897
        %v899 = vpop.f32.mrf.mxu0
        %900 = vdwg.mxu0
        %v901 = vsel %vm598, %v670, -inf
        %902 = vmax.xlane.f32.xlu0 %v901
        %v903 = vpop.xlane.xlu0 %902
        %v904 = vsel %vm598, %v746, -inf
        %905 = vmax.xlane.f32.xlu0 %v904
        %v906 = vpop.xlane.xlu0 %905
        %v907 = vsel %vm598, %v822, -inf
        %908 = vmax.xlane.f32.xlu0 %v907
        %v909 = vpop.xlane.xlu0 %908
        %v910 = vsel %vm598, %v898, -inf
        %911 = vmax.xlane.f32.xlu0 %v910
        %v912 = vpop.xlane.xlu0 %911
        %v913 = vsub.f32 %v670, %v903
        %v914 = vsub.f32 %v746, %v906
        %v915 = vsub.f32 %v822, %v909
        %v916 = vsub.f32 %v898, %v912
        %v917 = vmul.f32 %v913, 1.442695
        %v918 = vpow.pop %v917
        %v919 = vmul.f32 %v914, 1.442695
        %v920 = vpow.pop %v919
        %v921 = vmul.f32 %v915, 1.442695
        %v922 = vpow.pop %v921
        %v923 = vmul.f32 %v916, 1.442695
        %v924 = vpow.pop %v923
        %v925 = vsel %vm598, %v918, 0.0
        %926 = vadd.xlane.f32.xlu0 %v925
        %v927 = vpop.xlane.xlu0 %926
        %v928 = vsel %vm598, %v920, 0.0
        %929 = vadd.xlane.f32.xlu0 %v928
        %v930 = vpop.xlane.xlu0 %929
        %v931 = vsel %vm598, %v922, 0.0
        %932 = vadd.xlane.f32.xlu0 %v931
        %v933 = vpop.xlane.xlu0 %932
        %v934 = vsel %vm598, %v924, 0.0
        %935 = vadd.xlane.f32.xlu0 %v934
        %v936 = vpop.xlane.xlu0 %935
        %v937 = vrcp.pop %v927
        %v938 = vrcp.pop %v930
        %v939 = vrcp.pop %v933
        %v940 = vrcp.pop %v936
        %v941 = vmul.f32 %v918, %v937
        %v942 = vmul.f32 %v920, %v938
        %v943 = vmul.f32 %v922, %v939
        %v944 = vmul.f32 %v924, %v940
        %945 = vrot.lane.b32.xlu0 %v584, 64
        %v946 = vpop.permute.xlu0 %945
        %v949 = vsel %vm598, %v941, 0
        %951 = vmatprep.subr.mxu0 0.0
        %952 = vmatpush1.msra.mxu0 0.0
        %953 = vmatprep.subr.mxu0 0.0
        %954 = vmatpush1.msra.mxu0 0.0
        %955 = vmatprep.subr.mxu0 0.0
        %956 = vmatpush1.msra.mxu0 0.0
        %957 = vmatprep.subr.mxu0 0.0
        %958 = vmatpush1.msra.mxu0 0.0
        %959 = vmatprep.subr.mxu0 0.0
        %960 = vmatpush1.msra.mxu0 0.0
        %961 = vmatprep.subr.mxu0 0.0
        %962 = vmatpush1.msra.mxu0 0.0
        %963 = vmatprep.subr.mxu0 0.0
        %964 = vmatpush1.msra.mxu0 0.0
        %965 = vmatprep.subr.mxu0 0.0
        %966 = vmatpush1.msra.mxu0 0.0
        %967 = vmatprep.subr.mxu0 0.0
        %968 = vmatpush1.msra.mxu0 0.0
        %969 = vmatprep.subr.mxu0 0.0
        %970 = vmatpush1.msra.mxu0 0.0
        %971 = vmatprep.subr.mxu0 0.0
        %972 = vmatpush1.msra.mxu0 0.0
        %973 = vmatprep.subr.mxu0 0.0
        %974 = vmatpush1.msra.mxu0 0.0
        %975 = vmatprep.subr.mxu0 0.0
        %976 = vmatpush1.msra.mxu0 0.0
        %977 = vmatprep.subr.mxu0 0.0
        %978 = vmatpush1.msra.mxu0 0.0
        %979 = vmatprep.subr.mxu0 0.0
        %980 = vmatpush1.msra.mxu0 0.0
        %981 = vmatprep.subr.mxu0 0.0
        %982 = vmatpush1.msra.mxu0 %v946
        %983 = vmatprep.subr.mxu0 0.0
        %984 = vmatpush2.msra.mxu0 0.0
        %985 = vmatprep.subr.mxu0 0.0
        %986 = vmatpush2.msra.mxu0 0.0
        %987 = vmatprep.subr.mxu0 0.0
        %988 = vmatpush2.msra.mxu0 0.0
        %989 = vmatprep.subr.mxu0 0.0
        %990 = vmatpush2.msra.mxu0 0.0
        %991 = vmatprep.subr.mxu0 0.0
        %992 = vmatpush2.msra.mxu0 0.0
        %993 = vmatprep.subr.mxu0 0.0
        %994 = vmatpush2.msra.mxu0 0.0
        %995 = vmatprep.subr.mxu0 0.0
        %996 = vmatpush2.msra.mxu0 0.0
        %997 = vmatprep.subr.mxu0 0.0
        %998 = vmatpush2.msra.mxu0 0.0
        %999 = vmatprep.subr.mxu0 0.0
        %1000 = vmatpush2.msra.mxu0 0.0
        %1001 = vmatprep.subr.mxu0 0.0
        %1002 = vmatpush2.msra.mxu0 0.0
        %1003 = vmatprep.subr.mxu0 0.0
        %1004 = vmatpush2.msra.mxu0 0.0
        %1005 = vmatprep.subr.mxu0 0.0
        %1006 = vmatpush2.msra.mxu0 0.0
        %1007 = vmatprep.subr.mxu0 0.0
        %1008 = vmatpush2.msra.mxu0 0.0
        %1009 = vmatprep.subr.mxu0 0.0
        %1010 = vmatpush2.msra.mxu0 0.0
        %1011 = vmatprep.subr.mxu0 0.0
        %1012 = vmatpush2.msra.mxu0 0.0
        %1013 = vmatprep.subr.mxu0 0.0
        %1014 = vmatpush2.msra.mxu0 0.0
        %1015 = vmatprep.mubr.f32.mxu0 0.0
        %1016 = vmatmul.mubr.f32.gmra.mxu0 %v949
        %v1017 = vpop.f32.mrf.mxu0
        %v1018 = vadd.f32 0.0, %v1017
        %v1019 = vpop.f32.mrf.mxu0
        %1020 = vdwg.mxu0
        %1021 = vrot.lane.b32.xlu0 %v591, 64
        %v1022 = vpop.permute.xlu0 %1021
        %v1025 = vsel %vm598, %v942, 0
        %1027 = vmatprep.subr.mxu0 0.0
        %1028 = vmatpush1.msra.mxu0 0.0
        %1029 = vmatprep.subr.mxu0 0.0
        %1030 = vmatpush1.msra.mxu0 0.0
        %1031 = vmatprep.subr.mxu0 0.0
        %1032 = vmatpush1.msra.mxu0 0.0
        %1033 = vmatprep.subr.mxu0 0.0
        %1034 = vmatpush1.msra.mxu0 0.0
        %1035 = vmatprep.subr.mxu0 0.0
        %1036 = vmatpush1.msra.mxu0 0.0
        %1037 = vmatprep.subr.mxu0 0.0
        %1038 = vmatpush1.msra.mxu0 0.0
        %1039 = vmatprep.subr.mxu0 0.0
        %1040 = vmatpush1.msra.mxu0 0.0
        %1041 = vmatprep.subr.mxu0 0.0
        %1042 = vmatpush1.msra.mxu0 0.0
        %1043 = vmatprep.subr.mxu0 0.0
        %1044 = vmatpush1.msra.mxu0 0.0
        %1045 = vmatprep.subr.mxu0 0.0
        %1046 = vmatpush1.msra.mxu0 0.0
        %1047 = vmatprep.subr.mxu0 0.0
        %1048 = vmatpush1.msra.mxu0 0.0
        %1049 = vmatprep.subr.mxu0 0.0
        %1050 = vmatpush1.msra.mxu0 0.0
        %1051 = vmatprep.subr.mxu0 0.0
        %1052 = vmatpush1.msra.mxu0 0.0
        %1053 = vmatprep.subr.mxu0 0.0
        %1054 = vmatpush1.msra.mxu0 0.0
        %1055 = vmatprep.subr.mxu0 0.0
        %1056 = vmatpush1.msra.mxu0 0.0
        %1057 = vmatprep.subr.mxu0 0.0
        %1058 = vmatpush1.msra.mxu0 %v1022
        %1059 = vmatprep.subr.mxu0 0.0
        %1060 = vmatpush2.msra.mxu0 0.0
        %1061 = vmatprep.subr.mxu0 0.0
        %1062 = vmatpush2.msra.mxu0 0.0
        %1063 = vmatprep.subr.mxu0 0.0
        %1064 = vmatpush2.msra.mxu0 0.0
        %1065 = vmatprep.subr.mxu0 0.0
        %1066 = vmatpush2.msra.mxu0 0.0
        %1067 = vmatprep.subr.mxu0 0.0
        %1068 = vmatpush2.msra.mxu0 0.0
        %1069 = vmatprep.subr.mxu0 0.0
        %1070 = vmatpush2.msra.mxu0 0.0
        %1071 = vmatprep.subr.mxu0 0.0
        %1072 = vmatpush2.msra.mxu0 0.0
        %1073 = vmatprep.subr.mxu0 0.0
        %1074 = vmatpush2.msra.mxu0 0.0
        %1075 = vmatprep.subr.mxu0 0.0
        %1076 = vmatpush2.msra.mxu0 0.0
        %1077 = vmatprep.subr.mxu0 0.0
        %1078 = vmatpush2.msra.mxu0 0.0
        %1079 = vmatprep.subr.mxu0 0.0
        %1080 = vmatpush2.msra.mxu0 0.0
        %1081 = vmatprep.subr.mxu0 0.0
        %1082 = vmatpush2.msra.mxu0 0.0
        %1083 = vmatprep.subr.mxu0 0.0
        %1084 = vmatpush2.msra.mxu0 0.0
        %1085 = vmatprep.subr.mxu0 0.0
        %1086 = vmatpush2.msra.mxu0 0.0
        %1087 = vmatprep.subr.mxu0 0.0
        %1088 = vmatpush2.msra.mxu0 0.0
        %1089 = vmatprep.subr.mxu0 0.0
        %1090 = vmatpush2.msra.mxu0 0.0
        %1091 = vmatprep.mubr.f32.mxu0 0.0
        %1092 = vmatmul.mubr.f32.gmra.mxu0 %v1025
        %v1093 = vpop.f32.mrf.mxu0
        %v1094 = vadd.f32 0.0, %v1093
        %v1095 = vpop.f32.mrf.mxu0
        %1096 = vdwg.mxu0
        %1097 = vrot.lane.b32.xlu0 %v593, 64
        %v1098 = vpop.permute.xlu0 %1097
        %v1101 = vsel %vm598, %v943, 0
        %1103 = vmatprep.subr.mxu0 0.0
        %1104 = vmatpush1.msra.mxu0 0.0
        %1105 = vmatprep.subr.mxu0 0.0
        %1106 = vmatpush1.msra.mxu0 0.0
        %1107 = vmatprep.subr.mxu0 0.0
        %1108 = vmatpush1.msra.mxu0 0.0
        %1109 = vmatprep.subr.mxu0 0.0
        %1110 = vmatpush1.msra.mxu0 0.0
        %1111 = vmatprep.subr.mxu0 0.0
        %1112 = vmatpush1.msra.mxu0 0.0
        %1113 = vmatprep.subr.mxu0 0.0
        %1114 = vmatpush1.msra.mxu0 0.0
        %1115 = vmatprep.subr.mxu0 0.0
        %1116 = vmatpush1.msra.mxu0 0.0
        %1117 = vmatprep.subr.mxu0 0.0
        %1118 = vmatpush1.msra.mxu0 0.0
        %1119 = vmatprep.subr.mxu0 0.0
        %1120 = vmatpush1.msra.mxu0 0.0
        %1121 = vmatprep.subr.mxu0 0.0
        %1122 = vmatpush1.msra.mxu0 0.0
        %1123 = vmatprep.subr.mxu0 0.0
        %1124 = vmatpush1.msra.mxu0 0.0
        %1125 = vmatprep.subr.mxu0 0.0
        %1126 = vmatpush1.msra.mxu0 0.0
        %1127 = vmatprep.subr.mxu0 0.0
        %1128 = vmatpush1.msra.mxu0 0.0
        %1129 = vmatprep.subr.mxu0 0.0
        %1130 = vmatpush1.msra.mxu0 0.0
        %1131 = vmatprep.subr.mxu0 0.0
        %1132 = vmatpush1.msra.mxu0 0.0
        %1133 = vmatprep.subr.mxu0 0.0
        %1134 = vmatpush1.msra.mxu0 %v1098
        %1135 = vmatprep.subr.mxu0 0.0
        %1136 = vmatpush2.msra.mxu0 0.0
        %1137 = vmatprep.subr.mxu0 0.0
        %1138 = vmatpush2.msra.mxu0 0.0
        %1139 = vmatprep.subr.mxu0 0.0
        %1140 = vmatpush2.msra.mxu0 0.0
        %1141 = vmatprep.subr.mxu0 0.0
        %1142 = vmatpush2.msra.mxu0 0.0
        %1143 = vmatprep.subr.mxu0 0.0
        %1144 = vmatpush2.msra.mxu0 0.0
        %1145 = vmatprep.subr.mxu0 0.0
        %1146 = vmatpush2.msra.mxu0 0.0
        %1147 = vmatprep.subr.mxu0 0.0
        %1148 = vmatpush2.msra.mxu0 0.0
        %1149 = vmatprep.subr.mxu0 0.0
        %1150 = vmatpush2.msra.mxu0 0.0
        %1151 = vmatprep.subr.mxu0 0.0
        %1152 = vmatpush2.msra.mxu0 0.0
        %1153 = vmatprep.subr.mxu0 0.0
        %1154 = vmatpush2.msra.mxu0 0.0
        %1155 = vmatprep.subr.mxu0 0.0
        %1156 = vmatpush2.msra.mxu0 0.0
        %1157 = vmatprep.subr.mxu0 0.0
        %1158 = vmatpush2.msra.mxu0 0.0
        %1159 = vmatprep.subr.mxu0 0.0
        %1160 = vmatpush2.msra.mxu0 0.0
        %1161 = vmatprep.subr.mxu0 0.0
        %1162 = vmatpush2.msra.mxu0 0.0
        %1163 = vmatprep.subr.mxu0 0.0
        %1164 = vmatpush2.msra.mxu0 0.0
        %1165 = vmatprep.subr.mxu0 0.0
        %1166 = vmatpush2.msra.mxu0 0.0
        %1167 = vmatprep.mubr.f32.mxu0 0.0
        %1168 = vmatmul.mubr.f32.gmra.mxu0 %v1101
        %v1169 = vpop.f32.mrf.mxu0
        %v1170 = vadd.f32 0.0, %v1169
        %v1171 = vpop.f32.mrf.mxu0
        %1172 = vdwg.mxu0
        %1173 = vrot.lane.b32.xlu0 %v595, 64
        %v1174 = vpop.permute.xlu0 %1173
        %v1177 = vsel %vm598, %v944, 0
        %1179 = vmatprep.subr.mxu0 0.0
        %1180 = vmatpush1.msra.mxu0 0.0
        %1181 = vmatprep.subr.mxu0 0.0
        %1182 = vmatpush1.msra.mxu0 0.0
        %1183 = vmatprep.subr.mxu0 0.0
        %1184 = vmatpush1.msra.mxu0 0.0
        %1185 = vmatprep.subr.mxu0 0.0
        %1186 = vmatpush1.msra.mxu0 0.0
        %1187 = vmatprep.subr.mxu0 0.0
        %1188 = vmatpush1.msra.mxu0 0.0
        %1189 = vmatprep.subr.mxu0 0.0
        %1190 = vmatpush1.msra.mxu0 0.0
        %1191 = vmatprep.subr.mxu0 0.0
        %1192 = vmatpush1.msra.mxu0 0.0
        %1193 = vmatprep.subr.mxu0 0.0
        %1194 = vmatpush1.msra.mxu0 0.0
        %1195 = vmatprep.subr.mxu0 0.0
        %1196 = vmatpush1.msra.mxu0 0.0
        %1197 = vmatprep.subr.mxu0 0.0
        %1198 = vmatpush1.msra.mxu0 0.0
        %1199 = vmatprep.subr.mxu0 0.0
        %1200 = vmatpush1.msra.mxu0 0.0
        %1201 = vmatprep.subr.mxu0 0.0
        %1202 = vmatpush1.msra.mxu0 0.0
        %1203 = vmatprep.subr.mxu0 0.0
        %1204 = vmatpush1.msra.mxu0 0.0
        %1205 = vmatprep.subr.mxu0 0.0
        %1206 = vmatpush1.msra.mxu0 0.0
        %1207 = vmatprep.subr.mxu0 0.0
        %1208 = vmatpush1.msra.mxu0 0.0
        %1209 = vmatprep.subr.mxu0 0.0
        %1210 = vmatpush1.msra.mxu0 %v1174
        %1211 = vmatprep.subr.mxu0 0.0
        %1212 = vmatpush2.msra.mxu0 0.0
        %1213 = vmatprep.subr.mxu0 0.0
        %1214 = vmatpush2.msra.mxu0 0.0
        %1215 = vmatprep.subr.mxu0 0.0
        %1216 = vmatpush2.msra.mxu0 0.0
        %1217 = vmatprep.subr.mxu0 0.0
        %1218 = vmatpush2.msra.mxu0 0.0
        %1219 = vmatprep.subr.mxu0 0.0
        %1220 = vmatpush2.msra.mxu0 0.0
        %1221 = vmatprep.subr.mxu0 0.0
        %1222 = vmatpush2.msra.mxu0 0.0
        %1223 = vmatprep.subr.mxu0 0.0
        %1224 = vmatpush2.msra.mxu0 0.0
        %1225 = vmatprep.subr.mxu0 0.0
        %1226 = vmatpush2.msra.mxu0 0.0
        %1227 = vmatprep.subr.mxu0 0.0
        %1228 = vmatpush2.msra.mxu0 0.0
        %1229 = vmatprep.subr.mxu0 0.0
        %1230 = vmatpush2.msra.mxu0 0.0
        %1231 = vmatprep.subr.mxu0 0.0
        %1232 = vmatpush2.msra.mxu0 0.0
        %1233 = vmatprep.subr.mxu0 0.0
        %1234 = vmatpush2.msra.mxu0 0.0
        %1235 = vmatprep.subr.mxu0 0.0
        %1236 = vmatpush2.msra.mxu0 0.0
        %1237 = vmatprep.subr.mxu0 0.0
        %1238 = vmatpush2.msra.mxu0 0.0
        %1239 = vmatprep.subr.mxu0 0.0
        %1240 = vmatpush2.msra.mxu0 0.0
        %1241 = vmatprep.subr.mxu0 0.0
        %1242 = vmatpush2.msra.mxu0 0.0
        %1243 = vmatprep.mubr.f32.mxu0 0.0
        %1244 = vmatmul.mubr.f32.gmra.mxu0 %v1177
        %v1245 = vpop.f32.mrf.mxu0
        %v1246 = vadd.f32 0.0, %v1245
        %v1247 = vpop.f32.mrf.mxu0
        %1248 = vdwg.mxu0
        %1250 = vrot.lane.b32.xlu0 %v1094, 8
        %v1251 = vpop.permute.xlu0 %1250
        %1254 = vrot.lane.b32.xlu0 %v1170, 16
        %v1255 = vpop.permute.xlu0 %1254
        %1258 = vrot.lane.b32.xlu0 %v1246, 24
        %v1259 = vpop.permute.xlu0 %1258
        %v1261 = vsel %vm598, %v1018, %v1251
        %vm1262 = vcmask 130048
        %v1263 = vsel %vm1262, %v1261, %v1255
        %vm1264 = vcmask 195584
        %v1265 = vsel %vm1264, %v1263, %v1259
        %v1266 = vpack.c.bf16 %v1265, %v1265
        %v1267 = vld [vmem:[%s5] sm:$0xf]
        %v1268 = vld [vmem:[%s5 + $0x4] sm:$0xf]
        %v1269 = vld [vmem:[%s5 + $0x8] sm:$0xf]
        %v1270 = vld [vmem:[%s5 + $0xc] sm:$0xf]
        %v1271 = vld [vmem:[%s6] sm:$0x1]
        %v1273 = vlaneseq
        %v1274 = vshrl.u32 %v1273, 7
        %v1275 = vsub.s32 0, %v1274
        %v1276 = vrot.slane %v1271, %v1275
        %v1282 = vunpack.c.l.b16 %v1267
        %v1283 = vunpack.c.l.b16 %v1268
        %v1284 = vunpack.c.l.b16 %v1269
        %v1285 = vunpack.c.l.b16 %v1270
        %v1286 = vpack.c.b16 %v1283, %v1282
        %v1287 = vpack.c.b16 %v1285, %v1284
        %v1291 = vsel %vm493, %v1266, 0
        %1293 = vmatprep.subr.bf16.mxu0 0
        %1294 = vmatpush1.bf16.msra.mxu0 0
        %1295 = vmatprep.subr.bf16.mxu0 0
        %1296 = vmatpush1.bf16.msra.mxu0 0
        %1297 = vmatprep.subr.bf16.mxu0 0
        %1298 = vmatpush1.bf16.msra.mxu0 0
        %1299 = vmatprep.subr.bf16.mxu0 0
        %1300 = vmatpush1.bf16.msra.mxu0 0
        %1301 = vmatprep.subr.bf16.mxu0 0
        %1302 = vmatpush1.bf16.msra.mxu0 0
        %1303 = vmatprep.subr.bf16.mxu0 0
        %1304 = vmatpush1.bf16.msra.mxu0 0
        %1305 = vmatprep.subr.bf16.mxu0 0
        %1306 = vmatpush1.bf16.msra.mxu0 %v1287
        %1307 = vmatprep.subr.bf16.mxu0 0
        %1308 = vmatpush1.bf16.msra.mxu0 %v1286
        %1309 = vmatprep.subr.bf16.mxu0 0
        %1310 = vmatpush2.bf16.msra.mxu0 0
        %1311 = vmatprep.subr.bf16.mxu0 0
        %1312 = vmatpush2.bf16.msra.mxu0 0
        %1313 = vmatprep.subr.bf16.mxu0 0
        %1314 = vmatpush2.bf16.msra.mxu0 0
        %1315 = vmatprep.subr.bf16.mxu0 0
        %1316 = vmatpush2.bf16.msra.mxu0 0
        %1317 = vmatprep.subr.bf16.mxu0 0
        %1318 = vmatpush2.bf16.msra.mxu0 0
        %1319 = vmatprep.subr.bf16.mxu0 0
        %1320 = vmatpush2.bf16.msra.mxu0 0
        %1321 = vmatprep.subr.bf16.mxu0 0
        %1322 = vmatpush2.bf16.msra.mxu0 0
        %1323 = vmatprep.subr.bf16.mxu0 0
        %1324 = vmatpush2.bf16.msra.mxu0 0
        %1325 = vmatprep.mubr.bf16.mxu0 0
        %1326 = vmatmul.mubr.bf16.gmra.mxu0 %v1291
        %v1327 = vpop.f32.mrf.mxu0
        %v1328 = vadd.f32 %v1276, %v1327
        %v1329 = vpop.f32.mrf.mxu0
        %v1330 = vpop.f32.mrf.mxu0
        %v1331 = vpop.f32.mrf.mxu0
        %1332 = vdwg.mxu0
        %v1333 = vadd.f32 %v490, %v1328
        %v1334 = vld [vmem:[#allocation2] sm:$0x1]
        %v1335 = vld [vmem:[#allocation5] sm:$0x1]
        %v1336 = vsel %vm493, %v1333, 0.0
        %1337 = vadd.xlane.f32.xlu0 %v1336
        %v1338 = vpop.xlane.xlu0 %1337
        %v1339 = vmul.f32 %v1338, %v497
        %v1340 = vsub.f32 %v1333, %v1339
        %v1341 = vmul.f32 %v1340, %v1340
        %v1342 = vsel %vm493, %v1341, 0.0
        %1343 = vadd.xlane.f32.xlu0 %v1342
        %v1344 = vpop.xlane.xlu0 %1343
        %v1345 = vmul.f32 %v1344, %v497
        %v1346 = vadd.f32 %v1345, 1e-05
        %v1347 = vrsqrt.pop %v1346
        %v1348 = vmul.f32 %v1340, %v1347
        %v1350 = vlaneseq
        %v1351 = vshrl.u32 %v1350, 7
        %v1352 = vsub.s32 0, %v1351
        %v1353 = vrot.slane %v1334, %v1352
        %v1355 = vmul.f32 %v1348, %v1353
        %v1357 = vlaneseq
        %v1358 = vshrl.u32 %v1357, 7
        %v1359 = vsub.s32 0, %v1358
        %v1360 = vrot.slane %v1335, %v1359
        %v1362 = vadd.f32 %v1355, %v1360
        %v1363 = vpack.c.bf16 %v1362, %v1362
        %v1364 = vld [vmem:[#allocation7] sm:$0xf]
        %v1365 = vld [vmem:[#allocation7 + $0x4] sm:$0xf]
        %v1366 = vld [vmem:[#allocation7 + $0x8] sm:$0xf]
        %v1367 = vld [vmem:[#allocation7 + $0xc] sm:$0xf]
        %v1368 = vld [vmem:[#allocation8] sm:$0x1]
        %v1370 = vlaneseq
        %v1371 = vshrl.u32 %v1370, 7
        %v1372 = vsub.s32 0, %v1371
        %v1373 = vrot.slane %v1368, %v1372
        %v1379 = vunpack.c.l.b16 %v1364
        %v1380 = vunpack.c.l.b16 %v1365
        %v1381 = vunpack.c.l.b16 %v1366
        %v1382 = vunpack.c.l.b16 %v1367
        %v1383 = vpack.c.b16 %v1380, %v1379
        %v1384 = vpack.c.b16 %v1382, %v1381
        %v1388 = vsel %vm493, %v1363, 0
        %1390 = vmatprep.subr.bf16.mxu0 0
        %1391 = vmatpush1.bf16.msra.mxu0 0
        %1392 = vmatprep.subr.bf16.mxu0 0
        %1393 = vmatpush1.bf16.msra.mxu0 0
        %1394 = vmatprep.subr.bf16.mxu0 0
        %1395 = vmatpush1.bf16.msra.mxu0 0
        %1396 = vmatprep.subr.bf16.mxu0 0
        %1397 = vmatpush1.bf16.msra.mxu0 0
        %1398 = vmatprep.subr.bf16.mxu0 0
        %1399 = vmatpush1.bf16.msra.mxu0 0
        %1400 = vmatprep.subr.bf16.mxu0 0
        %1401 = vmatpush1.bf16.msra.mxu0 0
        %1402 = vmatprep.subr.bf16.mxu0 0
        %1403 = vmatpush1.bf16.msra.mxu0 %v1384
        %1404 = vmatprep.subr.bf16.mxu0 0
        %1405 = vmatpush1.bf16.msra.mxu0 %v1383
        %1406 = vmatprep.subr.bf16.mxu0 0
        %1407 = vmatpush2.bf16.msra.mxu0 0
        %1408 = vmatprep.subr.bf16.mxu0 0
        %1409 = vmatpush2.bf16.msra.mxu0 0
        %1410 = vmatprep.subr.bf16.mxu0 0
        %1411 = vmatpush2.bf16.msra.mxu0 0
        %1412 = vmatprep.subr.bf16.mxu0 0
        %1413 = vmatpush2.bf16.msra.mxu0 0
        %1414 = vmatprep.subr.bf16.mxu0 0
        %1415 = vmatpush2.bf16.msra.mxu0 0
        %1416 = vmatprep.subr.bf16.mxu0 0
        %1417 = vmatpush2.bf16.msra.mxu0 0
        %1418 = vmatprep.subr.bf16.mxu0 0
        %1419 = vmatpush2.bf16.msra.mxu0 0
        %1420 = vmatprep.subr.bf16.mxu0 0
        %1421 = vmatpush2.bf16.msra.mxu0 0
        %1422 = vmatprep.mubr.bf16.mxu0 0
        %1423 = vmatmul.mubr.bf16.gmra.mxu0 %v1388
        %v1424 = vpop.f32.mrf.mxu0
        %v1425 = vadd.f32 %v1373, %v1424
        %v1426 = vpop.f32.mrf.mxu0
        %v1427 = vpop.f32.mrf.mxu0
        %v1428 = vpop.f32.mrf.mxu0
        %1429 = vdwg.mxu0
        %v1430 = vmul.f32 %v1425, 0.5
        %v1431 = vmul.f32 %v1425, 0.70710677
        %vm1432 = vcmp.ge.f32.partialorder %v1431, 0.0
        %v1433 = vsel %vm1432, 1.0, -1.0
        %v1434 = vand.u32 2147483647, %v1431
        %v1435 = vmul.f32 %v1434, 0.3275911
        %v1436 = vadd.f32 %v1435, 1.0
        %v1437 = vrcp.pop %v1436
        %v1438 = vmul.f32 1.0, %v1437
        %v1439 = vmul.f32 %v1438, 1.0614054
        %v1440 = vadd.f32 %v1439, -1.4531521
        %v1441 = vmul.f32 %v1440, %v1438
        %v1442 = vadd.f32 %v1441, 1.4214138
        %v1443 = vmul.f32 %v1442, %v1438
        %v1444 = vadd.f32 %v1443, -0.28449672
        %v1445 = vmul.f32 %v1444, %v1438
        %v1446 = vadd.f32 %v1445, 0.2548296
        %v1447 = vmul.f32 %v1446, %v1438
        %v1448 = vsub.f32 0.0, %v1434
        %v1449 = vmul.f32 %v1448, %v1434
        %v1450 = vmul.f32 %v1449, 1.442695
        %v1451 = vpow.pop %v1450
        %v1452 = vmul.f32 %v1447, %v1451
        %v1453 = vsub.f32 1.0, %v1452
        %v1454 = vmul.f32 %v1433, %v1453
        %v1455 = vadd.f32 %v1454, 1.0
        %v1456 = vmul.f32 %v1430, %v1455
        %v1457 = vpack.c.bf16 %v1456, %v1456
        %v1458 = vld [vmem:[%s11] sm:$0xf]
        %v1459 = vld [vmem:[%s11 + $0x4] sm:$0xf]
        %v1460 = vld [vmem:[%s11 + $0x8] sm:$0xf]
        %v1461 = vld [vmem:[%s11 + $0xc] sm:$0xf]
        %v1462 = vld [vmem:[%s11 + $0x10] sm:$0xf]
        %v1463 = vld [vmem:[%s11 + $0x14] sm:$0xf]
        %v1464 = vld [vmem:[%s11 + $0x18] sm:$0xf]
        %v1465 = vld [vmem:[%s11 + $0x1c] sm:$0xf]
        %v1474 = vunpack.c.l.b16 %v1458
        %v1475 = vunpack.c.l.b16 %v1459
        %v1476 = vunpack.c.l.b16 %v1460
        %v1477 = vunpack.c.l.b16 %v1461
        %v1478 = vunpack.c.l.b16 %v1462
        %v1479 = vunpack.c.l.b16 %v1463
        %v1480 = vunpack.c.l.b16 %v1464
        %v1481 = vunpack.c.l.b16 %v1465
        %v1482 = vpack.c.b16 %v1475, %v1474
        %v1483 = vpack.c.b16 %v1477, %v1476
        %v1484 = vpack.c.b16 %v1479, %v1478
        %v1485 = vpack.c.b16 %v1481, %v1480
        %vm1490 = vcmask 523264
        %v1492 = vsel %vm1490, %v1457, 0
        %1494 = vmatprep.subr.bf16.mxu0 0
        %1495 = vmatpush1.bf16.msra.mxu0 0
        %1496 = vmatprep.subr.bf16.mxu0 0
        %1497 = vmatpush1.bf16.msra.mxu0 0
        %1498 = vmatprep.subr.bf16.mxu0 0
        %1499 = vmatpush1.bf16.msra.mxu0 0
        %1500 = vmatprep.subr.bf16.mxu0 0
        %1501 = vmatpush1.bf16.msra.mxu0 0
        %1502 = vmatprep.subr.bf16.mxu0 0
        %1503 = vmatpush1.bf16.msra.mxu0 %v1485
        %1504 = vmatprep.subr.bf16.mxu0 0
        %1505 = vmatpush1.bf16.msra.mxu0 %v1484
        %1506 = vmatprep.subr.bf16.mxu0 0
        %1507 = vmatpush1.bf16.msra.mxu0 %v1483
        %1508 = vmatprep.subr.bf16.mxu0 0
        %1509 = vmatpush1.bf16.msra.mxu0 %v1482
        %1510 = vmatprep.subr.bf16.mxu0 0
        %1511 = vmatpush2.bf16.msra.mxu0 0
        %1512 = vmatprep.subr.bf16.mxu0 0
        %1513 = vmatpush2.bf16.msra.mxu0 0
        %1514 = vmatprep.subr.bf16.mxu0 0
        %1515 = vmatpush2.bf16.msra.mxu0 0
        %1516 = vmatprep.subr.bf16.mxu0 0
        %1517 = vmatpush2.bf16.msra.mxu0 0
        %1518 = vmatprep.subr.bf16.mxu0 0
        %1519 = vmatpush2.bf16.msra.mxu0 0
        %1520 = vmatprep.subr.bf16.mxu0 0
        %1521 = vmatpush2.bf16.msra.mxu0 0
        %1522 = vmatprep.subr.bf16.mxu0 0
        %1523 = vmatpush2.bf16.msra.mxu0 0
        %1524 = vmatprep.subr.bf16.mxu0 0
        %1525 = vmatpush2.bf16.msra.mxu0 0
        %1526 = vmatprep.mubr.bf16.mxu0 0
        %1527 = vmatmul.mubr.bf16.gmra.mxu0 %v1492
        %v1528 = vpop.f32.mrf.mxu0
        %v1529 = vadd.f32 0.0, %v1528
        %v1530 = vpop.f32.mrf.mxu0
        %v1531 = vpop.f32.mrf.mxu0
        %v1532 = vpop.f32.mrf.mxu0
        %1533 = vdwg.mxu0
        %v1534 = vadd.f32 %v1333, %v1529
        %v1535 = vld [vmem:[%s12] sm:$0x1]
        %v1537 = vlaneseq
        %v1538 = vshrl.u32 %v1537, 7
        %v1539 = vsub.s32 0, %v1538
        %v1540 = vrot.slane %v1535, %v1539
        %v1542 = vadd.f32 %v1534, %v1540
        %1543 = vst.msk [vmem:[%s484] sm:$0xff] %vm493, %v1542
        %s1544 = sand.u32 %s316, 1
        %s1545 = scalar_lea.sflag [#allocation4], %s1544
        %s1546 = sand.u32 %s316, 1
        %s1547 = smul.addr %s1546, 8
        %s1548 = scalar_lea.vmem [#allocation10], %s1547
        // Predicated region
        $region89: #{tpu_custom_call.1} parent=71 // pred_check
          %p1549 = pneg %p326
        $region90: #{tpu_custom_call.1} parent=71 // pred_check_branch
          %1551 = sbr.rel (%p1549) target = $region92
        $region91: #{tpu_custom_call.1} parent=71 // pred_region
          %s1553 = ssub.s32 128, 128
          %1554 = vsyncadd %s1545, %s1553
          %s1555 = smul.addr %s30, 128
          %s1556 = scalar_lea.hbm %s13, %s1555
          %s1558 = sshll.u32 %s1548, 4
          %s1559 = int_to_ptr.vmem [resolvable:$true] %s1558
          %1561 = dma.vmem_to_hbm [thread:$0]  %s1559, 128, %s1556, %s1545
        $region92: #{tpu_custom_call.1} parent=71 // pred_fallthru
          _
      $region72: #{tpu_custom_call.1} parent=5 // pred_fallthru
        _
      %p1562 = scmp.le.s32.totalorder 2, %s25
      // Predicated region
      $region93: #{tpu_custom_call.1} parent=5 // pred_check
        %p1563 = pneg %p1562
      $region94: #{tpu_custom_call.1} parent=5 // pred_check_branch
        %1565 = sbr.rel (%p1563) target = $region96
      $region95: #{tpu_custom_call.1} parent=5 // pred_region
        %s1566 = ssub.s32 %s25, 2
        // Predicated region
        $region97: #{tpu_custom_call.1} parent=95 // pred_check
          %p1567 = pneg %p332
        $region98: #{tpu_custom_call.1} parent=95 // pred_check_branch
          %1569 = sbr.rel (%p1567) target = $region100
        $region99: #{tpu_custom_call.1} parent=95 // pred_region
          %s1570 = sand.u32 %s317, 1
          %s1571 = scalar_lea.sflag [#allocation4], %s1570
          %s1572 = sand.u32 %s317, 1
          %s1573 = smul.addr %s1572, 8
          %s1574 = scalar_lea.vmem [#allocation10], %s1573
          %1575 = dma.done %s1571, 128
        $region100: #{tpu_custom_call.1} parent=95 // pred_fallthru
          _
      $region96: #{tpu_custom_call.1} parent=5 // pred_fallthru
        _
    $region6: #{tpu_custom_call.1} parent=1 // loop_footer
      %s29 = sadd.s32 1, %s25
    $region7: #{tpu_custom_call.1} parent=1 // loop_footer_branch
      %24 = sbr.rel target = $region3
    $region8: #{tpu_custom_call.1} parent=1 // loop_exit
      _
    %1576 = vsyncpa [#allocation3], 1
    %s1577 = scalar_lea.sflag [#allocation3], 1
    %1578 = vsyncpa %s1577, 1
    %1579 = vsyncpa [#allocation6], 1
    %1580 = vsyncpa [#allocation9], 1
    %1581 = vsyncpa [#allocation4], 1
    %s1582 = scalar_lea.sflag [#allocation4], 1
    %1583 = vsyncpa %s1582, 1

</llo_original>
